<compile_context>
chip_gen: v5e
topology: v5e:2x2
jax: 0.10.0
libtpu: 0.0.40
codegen_flags: <defaults>
</compile_context>

<pallas_src>
import jax
import jax.numpy as jnp
from jax.experimental import pallas as pl
from jax.experimental.pallas import tpu as pltpu

IN_FEATURES = 784      # 28 * 28
HIDDEN = 512
OUT_FEATURES = 10
OUT_PAD = 128          # padded output width (lane-dense stores)
MAX_TB = 1024          # batch tile cap (HBM/overhead bound -> go big)


def _mlp_kernel(x_ref, w1_ref, b1_ref, w2_ref, b2_ref, o_ref):
    # fc1: (TB, 784)bf16 @ (784, 512)bf16 -> f32 accum, + bias
    x = x_ref[...].astype(jnp.bfloat16)
    h = jnp.dot(x, w1_ref[...], preferred_element_type=jnp.float32)
    # Fused bf16 tanh: bf16 EUP/VPU path on v6e/v7x, and the result feeds the
    # second MXU dot directly (no separate (TB,512) cast pass).  On v5e this
    # just promotes -- correct, no win, no harm.
    h = jnp.tanh((h + b1_ref[...]).astype(jnp.bfloat16))
    # fc2: (TB, 512)bf16 @ (512, 128)bf16 -> f32 (cols >= 10 are zero padding)
    y = jnp.dot(h, w2_ref[...], preferred_element_type=jnp.float32)
    y = y + b2_ref[...]
    # LeakyReLU(0.2), f32
    o_ref[...] = jnp.where(y > 0, y, 0.2 * y).astype(o_ref.dtype)


def prepare_params(params):
    """One-time packing of torch-style params into kernel layout.

    Returns (w1 bf16 (784,512), b1 f32 (1,512), w2 padded bf16 (512,128),
    b2 padded f32 (1,128)).
    """
    w1, b1, w2, b2 = params
    w1b = w1.astype(jnp.bfloat16)
    b1r = b1.reshape(1, HIDDEN).astype(jnp.float32)
    w2p = (jnp.zeros((HIDDEN, OUT_PAD), jnp.bfloat16)
           .at[:, :OUT_FEATURES].set(w2.astype(jnp.bfloat16)))
    b2p = (jnp.zeros((1, OUT_PAD), jnp.float32)
           .at[:, :OUT_FEATURES].set(b2.astype(jnp.float32)))
    return w1b, b1r, w2p, b2p


def _batch_tile(batch):
    """Batch tile: multiple of 8 sublanes, <= MAX_TB, and once batch >= 16 it
    is capped at round_up(batch/2, 8) so the grid has >= 2 steps and both v7x
    TensorCores get work under dimension_semantics=("parallel",)."""
    b8 = -(-batch // 8) * 8
    if b8 < 16:
        return b8
    half = -(-(b8 // 2) // 8) * 8          # round_up(b8/2, 8)
    return min(MAX_TB, half)


@jax.jit
def simple_nn_forward(x_nchw, prepared_params):
    """Forward pass of SimpleNN. x_nchw: (B, 1, 28, 28) float32 -> (B, 10)."""
    w1b, b1r, w2p, b2p = prepared_params
    B = x_nchw.shape[0]
    x = x_nchw.reshape(B, -1).astype(jnp.float32)         # (B, 784), free reshape

    TB = _batch_tile(B)
    grid = (pl.cdiv(B, TB),)    # ragged last block handled by masked stores

    out = pl.pallas_call(
        _mlp_kernel,
        out_shape=jax.ShapeDtypeStruct((B, OUT_PAD), jnp.float32),
        grid=grid,
        in_specs=[
            pl.BlockSpec((TB, IN_FEATURES), lambda i: (i, 0)),      # x tile
            pl.BlockSpec((IN_FEATURES, HIDDEN), lambda i: (0, 0)),  # w1 (resident)
            pl.BlockSpec((1, HIDDEN), lambda i: (0, 0)),            # b1
            pl.BlockSpec((HIDDEN, OUT_PAD), lambda i: (0, 0)),      # w2 (resident)
            pl.BlockSpec((1, OUT_PAD), lambda i: (0, 0)),           # b2
        ],
        out_specs=pl.BlockSpec((TB, OUT_PAD), lambda i: (i, 0)),
        compiler_params=pltpu.CompilerParams(
            dimension_semantics=("parallel",),
            vmem_limit_bytes=32 << 20,
        ),
    )(x, w1b, b1r, w2p, b2p)

    return out[:, :OUT_FEATURES]                          # (B, 10)


def init_params(key):
    """Deterministic init mimicking torch.nn.Linear default
    (U[-1/sqrt(fan_in), 1/sqrt(fan_in)]). Weights stored as (in, out)."""
    k1, k2, k3, k4 = jax.random.split(key, 4)
    bound1 = 1.0 / jnp.sqrt(jnp.float32(IN_FEATURES))
    bound2 = 1.0 / jnp.sqrt(jnp.float32(HIDDEN))
    w1 = jax.random.uniform(k1, (IN_FEATURES, HIDDEN), jnp.float32, -bound1, bound1)
    b1 = jax.random.uniform(k2, (HIDDEN,), jnp.float32, -bound1, bound1)
    w2 = jax.random.uniform(k3, (HIDDEN, OUT_FEATURES), jnp.float32, -bound2, bound2)
    b2 = jax.random.uniform(k4, (OUT_FEATURES,), jnp.float32, -bound2, bound2)
    return w1, b1, w2, b2


if __name__ == "__main__":
    key = jax.random.PRNGKey(0)
    kx, kp = jax.random.split(key)
    params = init_params(kp)
    prepared = prepare_params(params)          # one-time packing (bf16 + padding)

    B = 8
    x = jax.random.normal(kx, (B, 1, 28, 28), jnp.float32)   # NCHW, MNIST-like

    out = simple_nn_forward(x, prepared)
    out = jax.block_until_ready(out)
    assert out.shape == (B, OUT_FEATURES)

    # Reference with the SAME bf16 weights / bf16 tanh / f32 accumulation
    # (fair comparison against the kernel's arithmetic).
    w1b, b1r, w2p, b2p = prepared
    xf = x.reshape(B, -1)
    h_ref = jnp.tanh(
        (jnp.dot(xf.astype(jnp.bfloat16), w1b, preferred_element_type=jnp.float32)
         + b1r).astype(jnp.bfloat16))
    y_ref = jnp.dot(h_ref, w2p, preferred_element_type=jnp.float32) + b2p
    ref = jnp.where(y_ref > 0, y_ref, 0.2 * y_ref)[:, :OUT_FEATURES]
    assert jnp.allclose(out, ref, atol=1e-2, rtol=1e-2), \
        float(jnp.max(jnp.abs(out - ref)))

    # Loose sanity check vs. full-f32 math (bf16 quantization error only).
    w1, b1, w2, b2 = params
    y32 = jnp.tanh(xf @ w1 + b1) @ w2 + b2
    ref32 = jnp.where(y32 > 0, y32, 0.2 * y32)
    assert jnp.allclose(out, ref32, atol=5e-2, rtol=5e-2)

    print("KERNEL_OK")
</pallas_src>

<mosaic_0001>
module attributes {stable_mosaic.version = 11 : i64} {
  func.func @_mlp_kernel(%arg0: i32, %arg1: memref<8x784xf32, #tpu.memory_space<vmem>>, %arg2: memref<784x512xbf16, #tpu.memory_space<vmem>>, %arg3: memref<1x512xf32, #tpu.memory_space<vmem>>, %arg4: memref<512x128xbf16, #tpu.memory_space<vmem>>, %arg5: memref<1x128xf32, #tpu.memory_space<vmem>>, %arg6: memref<8x128xf32, #tpu.memory_space<vmem>>) attributes {dimension_semantics = [#tpu.dimension_semantics<parallel>], iteration_bounds = array<i64: 1>, scalar_prefetch = 0 : i64, scratch_operands = 0 : i64, tpu.core_type = #tpu.core_type<tc>, window_params = [{transform_indices = @transform_0, window_bounds = array<i64: 8, 784>}, {pipeline_mode = #tpu.pipeline_mode<synchronous>, transform_indices = @transform_1, window_bounds = array<i64: 784, 512>}, {pipeline_mode = #tpu.pipeline_mode<synchronous>, transform_indices = @transform_2, window_bounds = array<i64: 1, 512>}, {pipeline_mode = #tpu.pipeline_mode<synchronous>, transform_indices = @transform_3, window_bounds = array<i64: 512, 128>}, {pipeline_mode = #tpu.pipeline_mode<synchronous>, transform_indices = @transform_4, window_bounds = array<i64: 1, 128>}, {transform_indices = @transform_5, window_bounds = array<i64: 8, 128>}]} {
    %c0 = arith.constant 0 : index
    %c0_0 = arith.constant 0 : index
    %0 = vector.load %arg1[%c0, %c0_0] : memref<8x784xf32, #tpu.memory_space<vmem>>, vector<8x784xf32>
    %1 = arith.truncf %0 : vector<8x784xf32> to vector<8x784xbf16>
    %c0_1 = arith.constant 0 : index
    %c0_2 = arith.constant 0 : index
    %2 = vector.load %arg2[%c0_1, %c0_2] : memref<784x512xbf16, #tpu.memory_space<vmem>>, vector<784x512xbf16>
    %cst = arith.constant dense<0.000000e+00> : vector<8x512xf32>
    %3 = tpu.matmul %1, %2, %cst {dimension_numbers = #tpu.dot_dimension_numbers<[1], [0], [0], [1], [0, 0, 1, 1], [], []>} : vector<8x784xbf16>, vector<784x512xbf16>, vector<8x512xf32> -> vector<8x512xf32>
    %c0_3 = arith.constant 0 : index
    %c0_4 = arith.constant 0 : index
    %4 = vector.load %arg3[%c0_3, %c0_4] : memref<1x512xf32, #tpu.memory_space<vmem>>, vector<1x512xf32>
    %5 = vector.broadcast %4 : vector<1x512xf32> to vector<8x512xf32>
    %6 = arith.addf %3, %5 : vector<8x512xf32>
    %7 = arith.truncf %6 : vector<8x512xf32> to vector<8x512xbf16>
    %8 = math.tanh %7 : vector<8x512xbf16>
    %c0_5 = arith.constant 0 : index
    %c0_6 = arith.constant 0 : index
    %9 = vector.load %arg4[%c0_5, %c0_6] : memref<512x128xbf16, #tpu.memory_space<vmem>>, vector<512x128xbf16>
    %cst_7 = arith.constant dense<0.000000e+00> : vector<8x128xf32>
    %10 = tpu.matmul %8, %9, %cst_7 {dimension_numbers = #tpu.dot_dimension_numbers<[1], [0], [0], [1], [0, 0, 1, 1], [], []>} : vector<8x512xbf16>, vector<512x128xbf16>, vector<8x128xf32> -> vector<8x128xf32>
    %c0_8 = arith.constant 0 : index
    %c0_9 = arith.constant 0 : index
    %11 = vector.load %arg5[%c0_8, %c0_9] : memref<1x128xf32, #tpu.memory_space<vmem>>, vector<1x128xf32>
    %12 = vector.broadcast %11 : vector<1x128xf32> to vector<8x128xf32>
    %13 = arith.addf %10, %12 : vector<8x128xf32>
    %cst_10 = arith.constant 0.000000e+00 : f32
    %14 = vector.broadcast %cst_10 : f32 to vector<8x128xf32>
    %15 = arith.cmpf ogt, %13, %14 : vector<8x128xf32>
    %cst_11 = arith.constant 2.000000e-01 : f32
    %16 = vector.broadcast %cst_11 : f32 to vector<8x128xf32>
    %17 = arith.mulf %16, %13 : vector<8x128xf32>
    %18 = arith.select %15, %13, %17 : vector<8x128xi1>, vector<8x128xf32>
    %c0_12 = arith.constant 0 : index
    %c0_13 = arith.constant 0 : index
    %19 = vector.load %arg6[%c0_12, %c0_13] : memref<8x128xf32, #tpu.memory_space<vmem>>, vector<8x128xf32>
    tpu.vector_store %arg6[%c0_12, %c0_13], %18 {strides = array<i32>} : memref<8x128xf32, #tpu.memory_space<vmem>>, vector<8x128xf32>,
    return
  }
  func.func @transform_0(%arg0: i32) -> (i32, i32) {
    %c0_i32 = arith.constant 0 : i32
    %c0_i32_0 = arith.constant 0 : i32
    return %arg0, %c0_i32 : i32, i32
  }
  func.func @transform_1(%arg0: i32) -> (i32, i32) {
    %c0_i32 = arith.constant 0 : i32
    %c0_i32_0 = arith.constant 0 : i32
    %c0_i32_1 = arith.constant 0 : i32
    return %c0_i32, %c0_i32_0 : i32, i32
  }
  func.func @transform_2(%arg0: i32) -> (i32, i32) {
    %c0_i32 = arith.constant 0 : i32
    %c0_i32_0 = arith.constant 0 : i32
    %c0_i32_1 = arith.constant 0 : i32
    return %c0_i32, %c0_i32_0 : i32, i32
  }
  func.func @transform_3(%arg0: i32) -> (i32, i32) {
    %c0_i32 = arith.constant 0 : i32
    %c0_i32_0 = arith.constant 0 : i32
    %c0_i32_1 = arith.constant 0 : i32
    return %c0_i32, %c0_i32_0 : i32, i32
  }
  func.func @transform_4(%arg0: i32) -> (i32, i32) {
    %c0_i32 = arith.constant 0 : i32
    %c0_i32_0 = arith.constant 0 : i32
    %c0_i32_1 = arith.constant 0 : i32
    return %c0_i32, %c0_i32_0 : i32, i32
  }
  func.func @transform_5(%arg0: i32) -> (i32, i32) {
    %c0_i32 = arith.constant 0 : i32
    %c0_i32_0 = arith.constant 0 : i32
    return %arg0, %c0_i32 : i32, i32
  }
}

</mosaic_0001>

<llo_original>
// kernel: simple_nn_forward.1
$region0: #{simple_nn_forward.1}
  #allocation0 [shape = 'u32[]', space=smem, size = 0x4, offset = 0x4, fixed_abs, tag = 'smem constant byte address 0x4 - core index']
  #allocation1 [shape = 'u32[72,128]{1,0:T(1,128)}', space=vmem, size = 0x9000, scoped, tag = 'internal scratch']
  %s0 = inlined_call_operand.vmem [shape: f32[8,784], index: 0, kind: input, shape index: {}]
  %s1 = inlined_call_operand.hbm [shape: bf16[784,512], index: 1, kind: input, shape index: {}]
  %s2 = inlined_call_operand.vmem [shape: f32[1,512], index: 2, kind: input, shape index: {}]
  %s3 = inlined_call_operand.vmem [shape: bf16[512,128], index: 3, kind: input, shape index: {}]
  %s4 = inlined_call_operand.vmem [shape: f32[1,128], index: 4, kind: input, shape index: {}]
  %s5 = inlined_call_operand.hbm [shape: f32[8,128], index: 5, kind: output, shape index: {}]
  %s6 = sld [smem:[#allocation0]]
  $region34: #{simple_nn_forward.1} parent=0
    _
  %s8 = ssub.s32 1, %s6
  %s9 = scalar_select 0, %s8, %s6
  $region1: #{simple_nn_forward.1} parent=0
    #allocation2 [shape = 'u8[802816]{0}', space=vmem, size = 0xc4000, scoped, tag = 'input window, operand 1, single buffered']
    #allocation3 [shape = 's32[1]{0}', space=sflag, size = 0x4, scoped, tag = 'scoped memory for simple_nn_forward.1']
    #allocation4 [shape = 's32[1]{0}', space=sflag, size = 0x4, scoped, tag = 'scoped memory for simple_nn_forward.1']
    #allocation5 [shape = 'u8[4096]{0}', space=vmem, size = 0x1000, scoped, tag = 'output window, operand 0, single buffered']
    %10 = vsyncpa [#allocation3], 0
    %11 = vsyncpa [#allocation4], 0
    // Predicated region
    $region2: #{simple_nn_forward.1} parent=1 // pred_check
      _
    $region3: #{simple_nn_forward.1} parent=1 // pred_check_branch
      %13 = sbr.rel (0) target = $region5
    $region4: #{simple_nn_forward.1} parent=1 // pred_region
      _
    $region5: #{simple_nn_forward.1} parent=1 // pred_fallthru
      _
    // Predicated region
    $region6: #{simple_nn_forward.1} parent=1 // pred_check
      _
    $region7: #{simple_nn_forward.1} parent=1 // pred_check_branch
      %15 = sbr.rel (0) target = $region9
    $region8: #{simple_nn_forward.1} parent=1 // pred_region
      %17 = vsyncadd [#allocation3], 0
      %s18 = sshll.u32 %s1, 4
      %s19 = int_to_ptr.hbm [resolvable:$true] %s18
      %s20 = sshll.u32 [#allocation2], 4
      %s21 = int_to_ptr.vmem [resolvable:$true] %s20
      %26 = dma.hbm_to_vmem [thread:$0]  %s19, 25088, %s21, [#allocation3], 256, 256, 16
    $region9: #{simple_nn_forward.1} parent=1 // pred_fallthru
      _
    // Predicated region
    $region10: #{simple_nn_forward.1} parent=1 // pred_check
      _
    $region11: #{simple_nn_forward.1} parent=1 // pred_check_branch
      %28 = sbr.rel (0) target = $region13
    $region12: #{simple_nn_forward.1} parent=1 // pred_region
      _
    $region13: #{simple_nn_forward.1} parent=1 // pred_fallthru
      _
    // Predicated region
    $region14: #{simple_nn_forward.1} parent=1 // pred_check
      _
    $region15: #{simple_nn_forward.1} parent=1 // pred_check_branch
      %30 = sbr.rel (0) target = $region17
    $region16: #{simple_nn_forward.1} parent=1 // pred_region
      _
    $region17: #{simple_nn_forward.1} parent=1 // pred_fallthru
      _
    // Predicated region
    $region18: #{simple_nn_forward.1} parent=1 // pred_check
      _
    $region19: #{simple_nn_forward.1} parent=1 // pred_check_branch
      %32 = sbr.rel (0) target = $region21
    $region20: #{simple_nn_forward.1} parent=1 // pred_region
      _
    $region21: #{simple_nn_forward.1} parent=1 // pred_fallthru
      _
    // Predicated region
    $region22: #{simple_nn_forward.1} parent=1 // pred_check
      _
    $region23: #{simple_nn_forward.1} parent=1 // pred_check_branch
      %34 = sbr.rel (0) target = $region25
    $region24: #{simple_nn_forward.1} parent=1 // pred_region
      %36 = dma.done [#allocation3], 25088
    $region25: #{simple_nn_forward.1} parent=1 // pred_fallthru
      _
    %v38 = vld [vmem:[%s0] sm:$0xff]
    %v39 = vld [vmem:[%s0 + $0x8] sm:$0xff]
    %v40 = vld [vmem:[%s0 + $0x10] sm:$0xff]
    %v41 = vld [vmem:[%s0 + $0x18] sm:$0xff]
    %v42 = vld [vmem:[%s0 + $0x20] sm:$0xff]
    %v43 = vld [vmem:[%s0 + $0x28] sm:$0xff]
    %v44 = vld [vmem:[%s0 + $0x30] sm:$0xff]
    %v45 = vpack.c.bf16 %v38, %v38
    %v46 = vpack.c.bf16 %v39, %v39
    %v47 = vpack.c.bf16 %v40, %v40
    %v48 = vpack.c.bf16 %v41, %v41
    %v49 = vpack.c.bf16 %v42, %v42
    %v50 = vpack.c.bf16 %v43, %v43
    %v51 = vpack.c.bf16 %v44, %v44
    %v52 = vld [vmem:[#allocation2] sm:$0xff]
    %v53 = vld [vmem:[#allocation2 + $0x8] sm:$0xff]
    %v54 = vld [vmem:[#allocation2 + $0x10] sm:$0xff]
    %v55 = vld [vmem:[#allocation2 + $0x18] sm:$0xff]
    %v56 = vld [vmem:[#allocation2 + $0x20] sm:$0xff]
    %v57 = vld [vmem:[#allocation2 + $0x28] sm:$0xff]
    %v58 = vld [vmem:[#allocation2 + $0x30] sm:$0xff]
    %v59 = vld [vmem:[#allocation2 + $0x38] sm:$0xff]
    %v60 = vld [vmem:[#allocation2 + $0x40] sm:$0xff]
    %v61 = vld [vmem:[#allocation2 + $0x48] sm:$0xff]
    %v62 = vld [vmem:[#allocation2 + $0x50] sm:$0xff]
    %v63 = vld [vmem:[#allocation2 + $0x58] sm:$0xff]
    %v64 = vld [vmem:[#allocation2 + $0x60] sm:$0xff]
    %v65 = vld [vmem:[#allocation2 + $0x68] sm:$0xff]
    %v66 = vld [vmem:[#allocation2 + $0x70] sm:$0xff]
    %v67 = vld [vmem:[#allocation2 + $0x78] sm:$0xff]
    %v68 = vld [vmem:[#allocation2 + $0x80] sm:$0xff]
    %v69 = vld [vmem:[#allocation2 + $0x88] sm:$0xff]
    %v70 = vld [vmem:[#allocation2 + $0x90] sm:$0xff]
    %v71 = vld [vmem:[#allocation2 + $0x98] sm:$0xff]
    %v72 = vld [vmem:[#allocation2 + $0xa0] sm:$0xff]
    %v73 = vld [vmem:[#allocation2 + $0xa8] sm:$0xff]
    %v74 = vld [vmem:[#allocation2 + $0xb0] sm:$0xff]
    %v75 = vld [vmem:[#allocation2 + $0xb8] sm:$0xff]
    %v76 = vld [vmem:[#allocation2 + $0xc0] sm:$0xff]
    %v77 = vld [vmem:[#allocation2 + $0xc8] sm:$0xff]
    %v78 = vld [vmem:[#allocation2 + $0xd0] sm:$0xff]
    %v79 = vld [vmem:[#allocation2 + $0xd8] sm:$0xff]
    %v80 = vld [vmem:[#allocation2 + $0xe0] sm:$0xff]
    %v81 = vld [vmem:[#allocation2 + $0xe8] sm:$0xff]
    %v82 = vld [vmem:[#allocation2 + $0xf0] sm:$0xff]
    %v83 = vld [vmem:[#allocation2 + $0xf8] sm:$0xff]
    %v84 = vld [vmem:[#allocation2 + $0x100] sm:$0xff]
    %v85 = vld [vmem:[#allocation2 + $0x108] sm:$0xff]
    %v86 = vld [vmem:[#allocation2 + $0x110] sm:$0xff]
    %v87 = vld [vmem:[#allocation2 + $0x118] sm:$0xff]
    %v88 = vld [vmem:[#allocation2 + $0x120] sm:$0xff]
    %v89 = vld [vmem:[#allocation2 + $0x128] sm:$0xff]
    %v90 = vld [vmem:[#allocation2 + $0x130] sm:$0xff]
    %v91 = vld [vmem:[#allocation2 + $0x138] sm:$0xff]
    %v92 = vld [vmem:[#allocation2 + $0x140] sm:$0xff]
    %v93 = vld [vmem:[#allocation2 + $0x148] sm:$0xff]
    %v94 = vld [vmem:[#allocation2 + $0x150] sm:$0xff]
    %v95 = vld [vmem:[#allocation2 + $0x158] sm:$0xff]
    %v96 = vld [vmem:[#allocation2 + $0x160] sm:$0xff]
    %v97 = vld [vmem:[#allocation2 + $0x168] sm:$0xff]
    %v98 = vld [vmem:[#allocation2 + $0x170] sm:$0xff]
    %v99 = vld [vmem:[#allocation2 + $0x178] sm:$0xff]
    %v100 = vld [vmem:[#allocation2 + $0x180] sm:$0xff]
    %v101 = vld [vmem:[#allocation2 + $0x188] sm:$0xff]
    %v102 = vld [vmem:[#allocation2 + $0x190] sm:$0xff]
    %v103 = vld [vmem:[#allocation2 + $0x198] sm:$0xff]
    %v104 = vld [vmem:[#allocation2 + $0x1a0] sm:$0xff]
    %v105 = vld [vmem:[#allocation2 + $0x1a8] sm:$0xff]
    %v106 = vld [vmem:[#allocation2 + $0x1b0] sm:$0xff]
    %v107 = vld [vmem:[#allocation2 + $0x1b8] sm:$0xff]
    %v108 = vld [vmem:[#allocation2 + $0x1c0] sm:$0xff]
    %v109 = vld [vmem:[#allocation2 + $0x1c8] sm:$0xff]
    %v110 = vld [vmem:[#allocation2 + $0x1d0] sm:$0xff]
    %v111 = vld [vmem:[#allocation2 + $0x1d8] sm:$0xff]
    %v112 = vld [vmem:[#allocation2 + $0x1e0] sm:$0xff]
    %v113 = vld [vmem:[#allocation2 + $0x1e8] sm:$0xff]
    %v114 = vld [vmem:[#allocation2 + $0x1f0] sm:$0xff]
    %v115 = vld [vmem:[#allocation2 + $0x1f8] sm:$0xff]
    %v116 = vld [vmem:[#allocation2 + $0x200] sm:$0xff]
    %v117 = vld [vmem:[#allocation2 + $0x208] sm:$0xff]
    %v118 = vld [vmem:[#allocation2 + $0x210] sm:$0xff]
    %v119 = vld [vmem:[#allocation2 + $0x218] sm:$0xff]
    %v120 = vld [vmem:[#allocation2 + $0x220] sm:$0xff]
    %v121 = vld [vmem:[#allocation2 + $0x228] sm:$0xff]
    %v122 = vld [vmem:[#allocation2 + $0x230] sm:$0xff]
    %v123 = vld [vmem:[#allocation2 + $0x238] sm:$0xff]
    %v124 = vld [vmem:[#allocation2 + $0x240] sm:$0xff]
    %v125 = vld [vmem:[#allocation2 + $0x248] sm:$0xff]
    %v126 = vld [vmem:[#allocation2 + $0x250] sm:$0xff]
    %v127 = vld [vmem:[#allocation2 + $0x258] sm:$0xff]
    %v128 = vld [vmem:[#allocation2 + $0x260] sm:$0xff]
    %v129 = vld [vmem:[#allocation2 + $0x268] sm:$0xff]
    %v130 = vld [vmem:[#allocation2 + $0x270] sm:$0xff]
    %v131 = vld [vmem:[#allocation2 + $0x278] sm:$0xff]
    %v132 = vld [vmem:[#allocation2 + $0x280] sm:$0xff]
    %v133 = vld [vmem:[#allocation2 + $0x288] sm:$0xff]
    %v134 = vld [vmem:[#allocation2 + $0x290] sm:$0xff]
    %v135 = vld [vmem:[#allocation2 + $0x298] sm:$0xff]
    %v136 = vld [vmem:[#allocation2 + $0x2a0] sm:$0xff]
    %v137 = vld [vmem:[#allocation2 + $0x2a8] sm:$0xff]
    %v138 = vld [vmem:[#allocation2 + $0x2b0] sm:$0xff]
    %v139 = vld [vmem:[#allocation2 + $0x2b8] sm:$0xff]
    %v140 = vld [vmem:[#allocation2 + $0x2c0] sm:$0xff]
    %v141 = vld [vmem:[#allocation2 + $0x2c8] sm:$0xff]
    %v142 = vld [vmem:[#allocation2 + $0x2d0] sm:$0xff]
    %v143 = vld [vmem:[#allocation2 + $0x2d8] sm:$0xff]
    %v144 = vld [vmem:[#allocation2 + $0x2e0] sm:$0xff]
    %v145 = vld [vmem:[#allocation2 + $0x2e8] sm:$0xff]
    %v146 = vld [vmem:[#allocation2 + $0x2f0] sm:$0xff]
    %v147 = vld [vmem:[#allocation2 + $0x2f8] sm:$0xff]
    %v148 = vld [vmem:[#allocation2 + $0x300] sm:$0xff]
    %v149 = vld [vmem:[#allocation2 + $0x308] sm:$0xff]
    %v150 = vld [vmem:[#allocation2 + $0x310] sm:$0xff]
    %v151 = vld [vmem:[#allocation2 + $0x318] sm:$0xff]
    %v152 = vld [vmem:[#allocation2 + $0x320] sm:$0xff]
    %v153 = vld [vmem:[#allocation2 + $0x328] sm:$0xff]
    %v154 = vld [vmem:[#allocation2 + $0x330] sm:$0xff]
    %v155 = vld [vmem:[#allocation2 + $0x338] sm:$0xff]
    %v156 = vld [vmem:[#allocation2 + $0x340] sm:$0xff]
    %v157 = vld [vmem:[#allocation2 + $0x348] sm:$0xff]
    %v158 = vld [vmem:[#allocation2 + $0x350] sm:$0xff]
    %v159 = vld [vmem:[#allocation2 + $0x358] sm:$0xff]
    %v160 = vld [vmem:[#allocation2 + $0x360] sm:$0xff]
    %v161 = vld [vmem:[#allocation2 + $0x368] sm:$0xff]
    %v162 = vld [vmem:[#allocation2 + $0x370] sm:$0xff]
    %v163 = vld [vmem:[#allocation2 + $0x378] sm:$0xff]
    %v164 = vld [vmem:[#allocation2 + $0x380] sm:$0xff]
    %v165 = vld [vmem:[#allocation2 + $0x388] sm:$0xff]
    %v166 = vld [vmem:[#allocation2 + $0x390] sm:$0xff]
    %v167 = vld [vmem:[#allocation2 + $0x398] sm:$0xff]
    %v168 = vld [vmem:[#allocation2 + $0x3a0] sm:$0xff]
    %v169 = vld [vmem:[#allocation2 + $0x3a8] sm:$0xff]
    %v170 = vld [vmem:[#allocation2 + $0x3b0] sm:$0xff]
    %v171 = vld [vmem:[#allocation2 + $0x3b8] sm:$0xff]
    %v172 = vld [vmem:[#allocation2 + $0x3c0] sm:$0xff]
    %v173 = vld [vmem:[#allocation2 + $0x3c8] sm:$0xff]
    %v174 = vld [vmem:[#allocation2 + $0x3d0] sm:$0xff]
    %v175 = vld [vmem:[#allocation2 + $0x3d8] sm:$0xff]
    %v176 = vld [vmem:[#allocation2 + $0x3e0] sm:$0xff]
    %v177 = vld [vmem:[#allocation2 + $0x3e8] sm:$0xff]
    %v178 = vld [vmem:[#allocation2 + $0x3f0] sm:$0xff]
    %v179 = vld [vmem:[#allocation2 + $0x3f8] sm:$0xff]
    %v180 = vld [vmem:[#allocation2 + $0x400] sm:$0xff]
    %v181 = vld [vmem:[#allocation2 + $0x408] sm:$0xff]
    %v182 = vld [vmem:[#allocation2 + $0x410] sm:$0xff]
    %v183 = vld [vmem:[#allocation2 + $0x418] sm:$0xff]
    %v184 = vld [vmem:[#allocation2 + $0x420] sm:$0xff]
    %v185 = vld [vmem:[#allocation2 + $0x428] sm:$0xff]
    %v186 = vld [vmem:[#allocation2 + $0x430] sm:$0xff]
    %v187 = vld [vmem:[#allocation2 + $0x438] sm:$0xff]
    %v188 = vld [vmem:[#allocation2 + $0x440] sm:$0xff]
    %v189 = vld [vmem:[#allocation2 + $0x448] sm:$0xff]
    %v190 = vld [vmem:[#allocation2 + $0x450] sm:$0xff]
    %v191 = vld [vmem:[#allocation2 + $0x458] sm:$0xff]
    %v192 = vld [vmem:[#allocation2 + $0x460] sm:$0xff]
    %v193 = vld [vmem:[#allocation2 + $0x468] sm:$0xff]
    %v194 = vld [vmem:[#allocation2 + $0x470] sm:$0xff]
    %v195 = vld [vmem:[#allocation2 + $0x478] sm:$0xff]
    %v196 = vld [vmem:[#allocation2 + $0x480] sm:$0xff]
    %v197 = vld [vmem:[#allocation2 + $0x488] sm:$0xff]
    %v198 = vld [vmem:[#allocation2 + $0x490] sm:$0xff]
    %v199 = vld [vmem:[#allocation2 + $0x498] sm:$0xff]
    %v200 = vld [vmem:[#allocation2 + $0x4a0] sm:$0xff]
    %v201 = vld [vmem:[#allocation2 + $0x4a8] sm:$0xff]
    %v202 = vld [vmem:[#allocation2 + $0x4b0] sm:$0xff]
    %v203 = vld [vmem:[#allocation2 + $0x4b8] sm:$0xff]
    %v204 = vld [vmem:[#allocation2 + $0x4c0] sm:$0xff]
    %v205 = vld [vmem:[#allocation2 + $0x4c8] sm:$0xff]
    %v206 = vld [vmem:[#allocation2 + $0x4d0] sm:$0xff]
    %v207 = vld [vmem:[#allocation2 + $0x4d8] sm:$0xff]
    %v208 = vld [vmem:[#allocation2 + $0x4e0] sm:$0xff]
    %v209 = vld [vmem:[#allocation2 + $0x4e8] sm:$0xff]
    %v210 = vld [vmem:[#allocation2 + $0x4f0] sm:$0xff]
    %v211 = vld [vmem:[#allocation2 + $0x4f8] sm:$0xff]
    %v212 = vld [vmem:[#allocation2 + $0x500] sm:$0xff]
    %v213 = vld [vmem:[#allocation2 + $0x508] sm:$0xff]
    %v214 = vld [vmem:[#allocation2 + $0x510] sm:$0xff]
    %v215 = vld [vmem:[#allocation2 + $0x518] sm:$0xff]
    %v216 = vld [vmem:[#allocation2 + $0x520] sm:$0xff]
    %v217 = vld [vmem:[#allocation2 + $0x528] sm:$0xff]
    %v218 = vld [vmem:[#allocation2 + $0x530] sm:$0xff]
    %v219 = vld [vmem:[#allocation2 + $0x538] sm:$0xff]
    %v220 = vld [vmem:[#allocation2 + $0x540] sm:$0xff]
    %v221 = vld [vmem:[#allocation2 + $0x548] sm:$0xff]
    %v222 = vld [vmem:[#allocation2 + $0x550] sm:$0xff]
    %v223 = vld [vmem:[#allocation2 + $0x558] sm:$0xff]
    %v224 = vld [vmem:[#allocation2 + $0x560] sm:$0xff]
    %v225 = vld [vmem:[#allocation2 + $0x568] sm:$0xff]
    %v226 = vld [vmem:[#allocation2 + $0x570] sm:$0xff]
    %v227 = vld [vmem:[#allocation2 + $0x578] sm:$0xff]
    %v228 = vld [vmem:[#allocation2 + $0x580] sm:$0xff]
    %v229 = vld [vmem:[#allocation2 + $0x588] sm:$0xff]
    %v230 = vld [vmem:[#allocation2 + $0x590] sm:$0xff]
    %v231 = vld [vmem:[#allocation2 + $0x598] sm:$0xff]
    %v232 = vld [vmem:[#allocation2 + $0x5a0] sm:$0xff]
    %v233 = vld [vmem:[#allocation2 + $0x5a8] sm:$0xff]
    %v234 = vld [vmem:[#allocation2 + $0x5b0] sm:$0xff]
    %v235 = vld [vmem:[#allocation2 + $0x5b8] sm:$0xff]
    %v236 = vld [vmem:[#allocation2 + $0x5c0] sm:$0xff]
    %v237 = vld [vmem:[#allocation2 + $0x5c8] sm:$0xff]
    %v238 = vld [vmem:[#allocation2 + $0x5d0] sm:$0xff]
    %v239 = vld [vmem:[#allocation2 + $0x5d8] sm:$0xff]
    %v240 = vld [vmem:[#allocation2 + $0x5e0] sm:$0xff]
    %v241 = vld [vmem:[#allocation2 + $0x5e8] sm:$0xff]
    %v242 = vld [vmem:[#allocation2 + $0x5f0] sm:$0xff]
    %v243 = vld [vmem:[#allocation2 + $0x5f8] sm:$0xff]
    %v244 = vld [vmem:[#allocation2 + $0x600] sm:$0xff]
    %v245 = vld [vmem:[#allocation2 + $0x608] sm:$0xff]
    %v246 = vld [vmem:[#allocation2 + $0x610] sm:$0xff]
    %v247 = vld [vmem:[#allocation2 + $0x618] sm:$0xff]
    %v248 = vld [vmem:[%s2] sm:$0xf]
    %v250 = vperm.slane %v248, 0
    %v251 = vperm.slane %v248, 1
    %v252 = vperm.slane %v248, 2
    %v253 = vperm.slane %v248, 3
    %v454 = vunpack.c.l.b16 %v52
    %v455 = vunpack.c.h.b16 %v52
    %v456 = vunpack.c.l.b16 %v53
    %v457 = vunpack.c.h.b16 %v53
    %v458 = vunpack.c.l.b16 %v54
    %v459 = vunpack.c.h.b16 %v54
    %v460 = vunpack.c.l.b16 %v55
    %v461 = vunpack.c.h.b16 %v55
    %v462 = vunpack.c.l.b16 %v56
    %v463 = vunpack.c.h.b16 %v56
    %v464 = vunpack.c.l.b16 %v57
    %v465 = vunpack.c.h.b16 %v57
    %v466 = vunpack.c.l.b16 %v58
    %v467 = vunpack.c.h.b16 %v58
    %v468 = vunpack.c.l.b16 %v59
    %v469 = vunpack.c.h.b16 %v59
    %v470 = vunpack.c.l.b16 %v60
    %v471 = vunpack.c.h.b16 %v60
    %v472 = vunpack.c.l.b16 %v61
    %v473 = vunpack.c.h.b16 %v61
    %v474 = vunpack.c.l.b16 %v62
    %v475 = vunpack.c.h.b16 %v62
    %v476 = vunpack.c.l.b16 %v63
    %v477 = vunpack.c.h.b16 %v63
    %v478 = vunpack.c.l.b16 %v64
    %v479 = vunpack.c.h.b16 %v64
    %v480 = vunpack.c.l.b16 %v65
    %v481 = vunpack.c.h.b16 %v65
    %v482 = vunpack.c.l.b16 %v66
    %v483 = vunpack.c.h.b16 %v66
    %v484 = vunpack.c.l.b16 %v67
    %v485 = vunpack.c.h.b16 %v67
    %v486 = vunpack.c.l.b16 %v68
    %v487 = vunpack.c.h.b16 %v68
    %v488 = vunpack.c.l.b16 %v69
    %v489 = vunpack.c.h.b16 %v69
    %v490 = vunpack.c.l.b16 %v70
    %v491 = vunpack.c.h.b16 %v70
    %v492 = vunpack.c.l.b16 %v71
    %v493 = vunpack.c.h.b16 %v71
    %v494 = vunpack.c.l.b16 %v72
    %v495 = vunpack.c.h.b16 %v72
    %v496 = vunpack.c.l.b16 %v73
    %v497 = vunpack.c.h.b16 %v73
    %v498 = vunpack.c.l.b16 %v74
    %v499 = vunpack.c.h.b16 %v74
    %v500 = vunpack.c.l.b16 %v75
    %v501 = vunpack.c.h.b16 %v75
    %v502 = vunpack.c.l.b16 %v76
    %v503 = vunpack.c.h.b16 %v76
    %v504 = vunpack.c.l.b16 %v77
    %v505 = vunpack.c.h.b16 %v77
    %v506 = vunpack.c.l.b16 %v78
    %v507 = vunpack.c.h.b16 %v78
    %v508 = vunpack.c.l.b16 %v79
    %v509 = vunpack.c.h.b16 %v79
    %v510 = vunpack.c.l.b16 %v80
    %v511 = vunpack.c.h.b16 %v80
    %v512 = vunpack.c.l.b16 %v81
    %v513 = vunpack.c.h.b16 %v81
    %v514 = vunpack.c.l.b16 %v82
    %v515 = vunpack.c.h.b16 %v82
    %v516 = vunpack.c.l.b16 %v83
    %v517 = vunpack.c.h.b16 %v83
    %v518 = vunpack.c.l.b16 %v84
    %v519 = vunpack.c.h.b16 %v84
    %v520 = vunpack.c.l.b16 %v85
    %v521 = vunpack.c.h.b16 %v85
    %v522 = vunpack.c.l.b16 %v86
    %v523 = vunpack.c.h.b16 %v86
    %v524 = vunpack.c.l.b16 %v87
    %v525 = vunpack.c.h.b16 %v87
    %v526 = vunpack.c.l.b16 %v88
    %v527 = vunpack.c.h.b16 %v88
    %v528 = vunpack.c.l.b16 %v89
    %v529 = vunpack.c.h.b16 %v89
    %v530 = vunpack.c.l.b16 %v90
    %v531 = vunpack.c.h.b16 %v90
    %v532 = vunpack.c.l.b16 %v91
    %v533 = vunpack.c.h.b16 %v91
    %v534 = vunpack.c.l.b16 %v92
    %v535 = vunpack.c.h.b16 %v92
    %v536 = vunpack.c.l.b16 %v93
    %v537 = vunpack.c.h.b16 %v93
    %v538 = vunpack.c.l.b16 %v94
    %v539 = vunpack.c.h.b16 %v94
    %v540 = vunpack.c.l.b16 %v95
    %v541 = vunpack.c.h.b16 %v95
    %v542 = vunpack.c.l.b16 %v96
    %v543 = vunpack.c.h.b16 %v96
    %v544 = vunpack.c.l.b16 %v97
    %v545 = vunpack.c.h.b16 %v97
    %v546 = vunpack.c.l.b16 %v98
    %v547 = vunpack.c.h.b16 %v98
    %v548 = vunpack.c.l.b16 %v99
    %v549 = vunpack.c.h.b16 %v99
    %v550 = vunpack.c.l.b16 %v100
    %v551 = vunpack.c.h.b16 %v100
    %v552 = vunpack.c.l.b16 %v101
    %v553 = vunpack.c.h.b16 %v101
    %v554 = vunpack.c.l.b16 %v102
    %v555 = vunpack.c.h.b16 %v102
    %v556 = vunpack.c.l.b16 %v103
    %v557 = vunpack.c.h.b16 %v103
    %v558 = vunpack.c.l.b16 %v104
    %v559 = vunpack.c.h.b16 %v104
    %v560 = vunpack.c.l.b16 %v105
    %v561 = vunpack.c.h.b16 %v105
    %v562 = vunpack.c.l.b16 %v106
    %v563 = vunpack.c.h.b16 %v106
    %v564 = vunpack.c.l.b16 %v107
    %v565 = vunpack.c.h.b16 %v107
    %v566 = vunpack.c.l.b16 %v108
    %v567 = vunpack.c.h.b16 %v108
    %v568 = vunpack.c.l.b16 %v109
    %v569 = vunpack.c.h.b16 %v109
    %v570 = vunpack.c.l.b16 %v110
    %v571 = vunpack.c.h.b16 %v110
    %v572 = vunpack.c.l.b16 %v111
    %v573 = vunpack.c.h.b16 %v111
    %v574 = vunpack.c.l.b16 %v112
    %v575 = vunpack.c.h.b16 %v112
    %v576 = vunpack.c.l.b16 %v113
    %v577 = vunpack.c.h.b16 %v113
    %v578 = vunpack.c.l.b16 %v114
    %v579 = vunpack.c.h.b16 %v114
    %v580 = vunpack.c.l.b16 %v115
    %v581 = vunpack.c.h.b16 %v115
    %v582 = vunpack.c.l.b16 %v116
    %v583 = vunpack.c.h.b16 %v116
    %v584 = vunpack.c.l.b16 %v117
    %v585 = vunpack.c.h.b16 %v117
    %v586 = vunpack.c.l.b16 %v118
    %v587 = vunpack.c.h.b16 %v118
    %v588 = vunpack.c.l.b16 %v119
    %v589 = vunpack.c.h.b16 %v119
    %v590 = vunpack.c.l.b16 %v120
    %v591 = vunpack.c.h.b16 %v120
    %v592 = vunpack.c.l.b16 %v121
    %v593 = vunpack.c.h.b16 %v121
    %v594 = vunpack.c.l.b16 %v122
    %v595 = vunpack.c.h.b16 %v122
    %v596 = vunpack.c.l.b16 %v123
    %v597 = vunpack.c.h.b16 %v123
    %v598 = vunpack.c.l.b16 %v124
    %v599 = vunpack.c.h.b16 %v124
    %v600 = vunpack.c.l.b16 %v125
    %v601 = vunpack.c.h.b16 %v125
    %v602 = vunpack.c.l.b16 %v126
    %v603 = vunpack.c.h.b16 %v126
    %v604 = vunpack.c.l.b16 %v127
    %v605 = vunpack.c.h.b16 %v127
    %v606 = vunpack.c.l.b16 %v128
    %v607 = vunpack.c.h.b16 %v128
    %v608 = vunpack.c.l.b16 %v129
    %v609 = vunpack.c.h.b16 %v129
    %v610 = vunpack.c.l.b16 %v130
    %v611 = vunpack.c.h.b16 %v130
    %v612 = vunpack.c.l.b16 %v131
    %v613 = vunpack.c.h.b16 %v131
    %v614 = vunpack.c.l.b16 %v132
    %v615 = vunpack.c.h.b16 %v132
    %v616 = vunpack.c.l.b16 %v133
    %v617 = vunpack.c.h.b16 %v133
    %v618 = vunpack.c.l.b16 %v134
    %v619 = vunpack.c.h.b16 %v134
    %v620 = vunpack.c.l.b16 %v135
    %v621 = vunpack.c.h.b16 %v135
    %v622 = vunpack.c.l.b16 %v136
    %v623 = vunpack.c.h.b16 %v136
    %v624 = vunpack.c.l.b16 %v137
    %v625 = vunpack.c.h.b16 %v137
    %v626 = vunpack.c.l.b16 %v138
    %v627 = vunpack.c.h.b16 %v138
    %v628 = vunpack.c.l.b16 %v139
    %v629 = vunpack.c.h.b16 %v139
    %v630 = vunpack.c.l.b16 %v140
    %v631 = vunpack.c.h.b16 %v140
    %v632 = vunpack.c.l.b16 %v141
    %v633 = vunpack.c.h.b16 %v141
    %v634 = vunpack.c.l.b16 %v142
    %v635 = vunpack.c.h.b16 %v142
    %v636 = vunpack.c.l.b16 %v143
    %v637 = vunpack.c.h.b16 %v143
    %v638 = vunpack.c.l.b16 %v144
    %v639 = vunpack.c.h.b16 %v144
    %v640 = vunpack.c.l.b16 %v145
    %v641 = vunpack.c.h.b16 %v145
    %v642 = vunpack.c.l.b16 %v146
    %v643 = vunpack.c.h.b16 %v146
    %v644 = vunpack.c.l.b16 %v147
    %v645 = vunpack.c.h.b16 %v147
    %v646 = vunpack.c.l.b16 %v148
    %v647 = vunpack.c.h.b16 %v148
    %v648 = vunpack.c.l.b16 %v149
    %v649 = vunpack.c.h.b16 %v149
    %v650 = vunpack.c.l.b16 %v150
    %v651 = vunpack.c.h.b16 %v150
    %v652 = vunpack.c.l.b16 %v151
    %v653 = vunpack.c.h.b16 %v151
    %v654 = vunpack.c.l.b16 %v152
    %v655 = vunpack.c.h.b16 %v152
    %v656 = vunpack.c.l.b16 %v153
    %v657 = vunpack.c.h.b16 %v153
    %v658 = vunpack.c.l.b16 %v154
    %v659 = vunpack.c.h.b16 %v154
    %v660 = vunpack.c.l.b16 %v155
    %v661 = vunpack.c.h.b16 %v155
    %v662 = vunpack.c.l.b16 %v156
    %v663 = vunpack.c.h.b16 %v156
    %v664 = vunpack.c.l.b16 %v157
    %v665 = vunpack.c.h.b16 %v157
    %v666 = vunpack.c.l.b16 %v158
    %v667 = vunpack.c.h.b16 %v158
    %v668 = vunpack.c.l.b16 %v159
    %v669 = vunpack.c.h.b16 %v159
    %v670 = vunpack.c.l.b16 %v160
    %v671 = vunpack.c.h.b16 %v160
    %v672 = vunpack.c.l.b16 %v161
    %v673 = vunpack.c.h.b16 %v161
    %v674 = vunpack.c.l.b16 %v162
    %v675 = vunpack.c.h.b16 %v162
    %v676 = vunpack.c.l.b16 %v163
    %v677 = vunpack.c.h.b16 %v163
    %v678 = vunpack.c.l.b16 %v164
    %v679 = vunpack.c.h.b16 %v164
    %v680 = vunpack.c.l.b16 %v165
    %v681 = vunpack.c.h.b16 %v165
    %v682 = vunpack.c.l.b16 %v166
    %v683 = vunpack.c.h.b16 %v166
    %v684 = vunpack.c.l.b16 %v167
    %v685 = vunpack.c.h.b16 %v167
    %v686 = vunpack.c.l.b16 %v168
    %v687 = vunpack.c.h.b16 %v168
    %v688 = vunpack.c.l.b16 %v169
    %v689 = vunpack.c.h.b16 %v169
    %v690 = vunpack.c.l.b16 %v170
    %v691 = vunpack.c.h.b16 %v170
    %v692 = vunpack.c.l.b16 %v171
    %v693 = vunpack.c.h.b16 %v171
    %v694 = vunpack.c.l.b16 %v172
    %v695 = vunpack.c.h.b16 %v172
    %v696 = vunpack.c.l.b16 %v173
    %v697 = vunpack.c.h.b16 %v173
    %v698 = vunpack.c.l.b16 %v174
    %v699 = vunpack.c.h.b16 %v174
    %v700 = vunpack.c.l.b16 %v175
    %v701 = vunpack.c.h.b16 %v175
    %v702 = vunpack.c.l.b16 %v176
    %v703 = vunpack.c.h.b16 %v176
    %v704 = vunpack.c.l.b16 %v177
    %v705 = vunpack.c.h.b16 %v177
    %v706 = vunpack.c.l.b16 %v178
    %v707 = vunpack.c.h.b16 %v178
    %v708 = vunpack.c.l.b16 %v179
    %v709 = vunpack.c.h.b16 %v179
    %v710 = vunpack.c.l.b16 %v180
    %v711 = vunpack.c.h.b16 %v180
    %v712 = vunpack.c.l.b16 %v181
    %v713 = vunpack.c.h.b16 %v181
    %v714 = vunpack.c.l.b16 %v182
    %v715 = vunpack.c.h.b16 %v182
    %v716 = vunpack.c.l.b16 %v183
    %v717 = vunpack.c.h.b16 %v183
    %v718 = vunpack.c.l.b16 %v184
    %v719 = vunpack.c.h.b16 %v184
    %v720 = vunpack.c.l.b16 %v185
    %v721 = vunpack.c.h.b16 %v185
    %v722 = vunpack.c.l.b16 %v186
    %v723 = vunpack.c.h.b16 %v186
    %v724 = vunpack.c.l.b16 %v187
    %v725 = vunpack.c.h.b16 %v187
    %v726 = vunpack.c.l.b16 %v188
    %v727 = vunpack.c.h.b16 %v188
    %v728 = vunpack.c.l.b16 %v189
    %v729 = vunpack.c.h.b16 %v189
    %v730 = vunpack.c.l.b16 %v190
    %v731 = vunpack.c.h.b16 %v190
    %v732 = vunpack.c.l.b16 %v191
    %v733 = vunpack.c.h.b16 %v191
    %v734 = vunpack.c.l.b16 %v192
    %v735 = vunpack.c.h.b16 %v192
    %v736 = vunpack.c.l.b16 %v193
    %v737 = vunpack.c.h.b16 %v193
    %v738 = vunpack.c.l.b16 %v194
    %v739 = vunpack.c.h.b16 %v194
    %v740 = vunpack.c.l.b16 %v195
    %v741 = vunpack.c.h.b16 %v195
    %v742 = vunpack.c.l.b16 %v196
    %v743 = vunpack.c.h.b16 %v196
    %v744 = vunpack.c.l.b16 %v197
    %v745 = vunpack.c.h.b16 %v197
    %v746 = vunpack.c.l.b16 %v198
    %v747 = vunpack.c.h.b16 %v198
    %v748 = vunpack.c.l.b16 %v199
    %v749 = vunpack.c.h.b16 %v199
    %v750 = vunpack.c.l.b16 %v200
    %v751 = vunpack.c.h.b16 %v200
    %v752 = vunpack.c.l.b16 %v201
    %v753 = vunpack.c.h.b16 %v201
    %v754 = vunpack.c.l.b16 %v202
    %v755 = vunpack.c.h.b16 %v202
    %v756 = vunpack.c.l.b16 %v203
    %v757 = vunpack.c.h.b16 %v203
    %v758 = vunpack.c.l.b16 %v204
    %v759 = vunpack.c.h.b16 %v204
    %v760 = vunpack.c.l.b16 %v205
    %v761 = vunpack.c.h.b16 %v205
    %v762 = vunpack.c.l.b16 %v206
    %v763 = vunpack.c.h.b16 %v206
    %v764 = vunpack.c.l.b16 %v207
    %v765 = vunpack.c.h.b16 %v207
    %v766 = vunpack.c.l.b16 %v208
    %v767 = vunpack.c.h.b16 %v208
    %v768 = vunpack.c.l.b16 %v209
    %v769 = vunpack.c.h.b16 %v209
    %v770 = vunpack.c.l.b16 %v210
    %v771 = vunpack.c.h.b16 %v210
    %v772 = vunpack.c.l.b16 %v211
    %v773 = vunpack.c.h.b16 %v211
    %v774 = vunpack.c.l.b16 %v212
    %v775 = vunpack.c.h.b16 %v212
    %v776 = vunpack.c.l.b16 %v213
    %v777 = vunpack.c.h.b16 %v213
    %v778 = vunpack.c.l.b16 %v214
    %v779 = vunpack.c.h.b16 %v214
    %v780 = vunpack.c.l.b16 %v215
    %v781 = vunpack.c.h.b16 %v215
    %v782 = vunpack.c.l.b16 %v216
    %v783 = vunpack.c.h.b16 %v216
    %v784 = vunpack.c.l.b16 %v217
    %v785 = vunpack.c.h.b16 %v217
    %v786 = vunpack.c.l.b16 %v218
    %v787 = vunpack.c.h.b16 %v218
    %v788 = vunpack.c.l.b16 %v219
    %v789 = vunpack.c.h.b16 %v219
    %v790 = vunpack.c.l.b16 %v220
    %v791 = vunpack.c.h.b16 %v220
    %v792 = vunpack.c.l.b16 %v221
    %v793 = vunpack.c.h.b16 %v221
    %v794 = vunpack.c.l.b16 %v222
    %v795 = vunpack.c.h.b16 %v222
    %v796 = vunpack.c.l.b16 %v223
    %v797 = vunpack.c.h.b16 %v223
    %v798 = vunpack.c.l.b16 %v224
    %v799 = vunpack.c.h.b16 %v224
    %v800 = vunpack.c.l.b16 %v225
    %v801 = vunpack.c.h.b16 %v225
    %v802 = vunpack.c.l.b16 %v226
    %v803 = vunpack.c.h.b16 %v226
    %v804 = vunpack.c.l.b16 %v227
    %v805 = vunpack.c.h.b16 %v227
    %v806 = vunpack.c.l.b16 %v228
    %v807 = vunpack.c.h.b16 %v228
    %v808 = vunpack.c.l.b16 %v229
    %v809 = vunpack.c.h.b16 %v229
    %v810 = vunpack.c.l.b16 %v230
    %v811 = vunpack.c.h.b16 %v230
    %v812 = vunpack.c.l.b16 %v231
    %v813 = vunpack.c.h.b16 %v231
    %v814 = vunpack.c.l.b16 %v232
    %v815 = vunpack.c.h.b16 %v232
    %v816 = vunpack.c.l.b16 %v233
    %v817 = vunpack.c.h.b16 %v233
    %v818 = vunpack.c.l.b16 %v234
    %v819 = vunpack.c.h.b16 %v234
    %v820 = vunpack.c.l.b16 %v235
    %v821 = vunpack.c.h.b16 %v235
    %v822 = vunpack.c.l.b16 %v236
    %v823 = vunpack.c.h.b16 %v236
    %v824 = vunpack.c.l.b16 %v237
    %v825 = vunpack.c.h.b16 %v237
    %v826 = vunpack.c.l.b16 %v238
    %v827 = vunpack.c.h.b16 %v238
    %v828 = vunpack.c.l.b16 %v239
    %v829 = vunpack.c.h.b16 %v239
    %v830 = vunpack.c.l.b16 %v240
    %v831 = vunpack.c.h.b16 %v240
    %v832 = vunpack.c.l.b16 %v241
    %v833 = vunpack.c.h.b16 %v241
    %v834 = vunpack.c.l.b16 %v242
    %v835 = vunpack.c.h.b16 %v242
    %v836 = vunpack.c.l.b16 %v243
    %v837 = vunpack.c.h.b16 %v243
    %v838 = vunpack.c.l.b16 %v244
    %v839 = vunpack.c.h.b16 %v244
    %v840 = vunpack.c.l.b16 %v245
    %v841 = vunpack.c.h.b16 %v245
    %v842 = vunpack.c.l.b16 %v246
    %v843 = vunpack.c.h.b16 %v246
    %v844 = vunpack.c.l.b16 %v247
    %v845 = vunpack.c.h.b16 %v247
    %v846 = vpack.c.b16 %v458, %v454
    %v847 = vpack.c.b16 %v459, %v455
    %v848 = vpack.c.b16 %v460, %v456
    %v849 = vpack.c.b16 %v461, %v457
    %v850 = vpack.c.b16 %v466, %v462
    %v851 = vpack.c.b16 %v467, %v463
    %v852 = vpack.c.b16 %v468, %v464
    %v853 = vpack.c.b16 %v469, %v465
    %v854 = vpack.c.b16 %v474, %v470
    %v855 = vpack.c.b16 %v475, %v471
    %v856 = vpack.c.b16 %v476, %v472
    %v857 = vpack.c.b16 %v477, %v473
    %v858 = vpack.c.b16 %v482, %v478
    %v859 = vpack.c.b16 %v483, %v479
    %v860 = vpack.c.b16 %v484, %v480
    %v861 = vpack.c.b16 %v485, %v481
    %v862 = vpack.c.b16 %v490, %v486
    %v863 = vpack.c.b16 %v491, %v487
    %v864 = vpack.c.b16 %v492, %v488
    %v865 = vpack.c.b16 %v493, %v489
    %v866 = vpack.c.b16 %v498, %v494
    %v867 = vpack.c.b16 %v499, %v495
    %v868 = vpack.c.b16 %v500, %v496
    %v869 = vpack.c.b16 %v501, %v497
    %v870 = vpack.c.b16 %v506, %v502
    %v871 = vpack.c.b16 %v507, %v503
    %v872 = vpack.c.b16 %v508, %v504
    %v873 = vpack.c.b16 %v509, %v505
    %v874 = vpack.c.b16 %v514, %v510
    %v875 = vpack.c.b16 %v515, %v511
    %v876 = vpack.c.b16 %v516, %v512
    %v877 = vpack.c.b16 %v517, %v513
    %v878 = vpack.c.b16 %v522, %v518
    %v879 = vpack.c.b16 %v523, %v519
    %v880 = vpack.c.b16 %v524, %v520
    %v881 = vpack.c.b16 %v525, %v521
    %v882 = vpack.c.b16 %v530, %v526
    %v883 = vpack.c.b16 %v531, %v527
    %v884 = vpack.c.b16 %v532, %v528
    %v885 = vpack.c.b16 %v533, %v529
    %v886 = vpack.c.b16 %v538, %v534
    %v887 = vpack.c.b16 %v539, %v535
    %v888 = vpack.c.b16 %v540, %v536
    %v889 = vpack.c.b16 %v541, %v537
    %v890 = vpack.c.b16 %v546, %v542
    %v891 = vpack.c.b16 %v547, %v543
    %v892 = vpack.c.b16 %v548, %v544
    %v893 = vpack.c.b16 %v549, %v545
    %v894 = vpack.c.b16 %v554, %v550
    %v895 = vpack.c.b16 %v555, %v551
    %v896 = vpack.c.b16 %v556, %v552
    %v897 = vpack.c.b16 %v557, %v553
    %v898 = vpack.c.b16 %v562, %v558
    %v899 = vpack.c.b16 %v563, %v559
    %v900 = vpack.c.b16 %v564, %v560
    %v901 = vpack.c.b16 %v565, %v561
    %v902 = vpack.c.b16 %v570, %v566
    %v903 = vpack.c.b16 %v571, %v567
    %v904 = vpack.c.b16 %v572, %v568
    %v905 = vpack.c.b16 %v573, %v569
    %v906 = vpack.c.b16 %v578, %v574
    %v907 = vpack.c.b16 %v579, %v575
    %v908 = vpack.c.b16 %v580, %v576
    %v909 = vpack.c.b16 %v581, %v577
    %v910 = vpack.c.b16 %v586, %v582
    %v911 = vpack.c.b16 %v587, %v583
    %v912 = vpack.c.b16 %v588, %v584
    %v913 = vpack.c.b16 %v589, %v585
    %v914 = vpack.c.b16 %v594, %v590
    %v915 = vpack.c.b16 %v595, %v591
    %v916 = vpack.c.b16 %v596, %v592
    %v917 = vpack.c.b16 %v597, %v593
    %v918 = vpack.c.b16 %v602, %v598
    %v919 = vpack.c.b16 %v603, %v599
    %v920 = vpack.c.b16 %v604, %v600
    %v921 = vpack.c.b16 %v605, %v601
    %v922 = vpack.c.b16 %v610, %v606
    %v923 = vpack.c.b16 %v611, %v607
    %v924 = vpack.c.b16 %v612, %v608
    %v925 = vpack.c.b16 %v613, %v609
    %v926 = vpack.c.b16 %v618, %v614
    %v927 = vpack.c.b16 %v619, %v615
    %v928 = vpack.c.b16 %v620, %v616
    %v929 = vpack.c.b16 %v621, %v617
    %v930 = vpack.c.b16 %v626, %v622
    %v931 = vpack.c.b16 %v627, %v623
    %v932 = vpack.c.b16 %v628, %v624
    %v933 = vpack.c.b16 %v629, %v625
    %v934 = vpack.c.b16 %v634, %v630
    %v935 = vpack.c.b16 %v635, %v631
    %v936 = vpack.c.b16 %v636, %v632
    %v937 = vpack.c.b16 %v637, %v633
    %v938 = vpack.c.b16 %v642, %v638
    %v939 = vpack.c.b16 %v643, %v639
    %v940 = vpack.c.b16 %v644, %v640
    %v941 = vpack.c.b16 %v645, %v641
    %v942 = vpack.c.b16 %v650, %v646
    %v943 = vpack.c.b16 %v651, %v647
    %v944 = vpack.c.b16 %v652, %v648
    %v945 = vpack.c.b16 %v653, %v649
    %v946 = vpack.c.b16 %v658, %v654
    %v947 = vpack.c.b16 %v659, %v655
    %v948 = vpack.c.b16 %v660, %v656
    %v949 = vpack.c.b16 %v661, %v657
    %v950 = vpack.c.b16 %v666, %v662
    %v951 = vpack.c.b16 %v667, %v663
    %v952 = vpack.c.b16 %v668, %v664
    %v953 = vpack.c.b16 %v669, %v665
    %v954 = vpack.c.b16 %v674, %v670
    %v955 = vpack.c.b16 %v675, %v671
    %v956 = vpack.c.b16 %v676, %v672
    %v957 = vpack.c.b16 %v677, %v673
    %v958 = vpack.c.b16 %v682, %v678
    %v959 = vpack.c.b16 %v683, %v679
    %v960 = vpack.c.b16 %v684, %v680
    %v961 = vpack.c.b16 %v685, %v681
    %v962 = vpack.c.b16 %v690, %v686
    %v963 = vpack.c.b16 %v691, %v687
    %v964 = vpack.c.b16 %v692, %v688
    %v965 = vpack.c.b16 %v693, %v689
    %v966 = vpack.c.b16 %v698, %v694
    %v967 = vpack.c.b16 %v699, %v695
    %v968 = vpack.c.b16 %v700, %v696
    %v969 = vpack.c.b16 %v701, %v697
    %v970 = vpack.c.b16 %v706, %v702
    %v971 = vpack.c.b16 %v707, %v703
    %v972 = vpack.c.b16 %v708, %v704
    %v973 = vpack.c.b16 %v709, %v705
    %v974 = vpack.c.b16 %v714, %v710
    %v975 = vpack.c.b16 %v715, %v711
    %v976 = vpack.c.b16 %v716, %v712
    %v977 = vpack.c.b16 %v717, %v713
    %v978 = vpack.c.b16 %v722, %v718
    %v979 = vpack.c.b16 %v723, %v719
    %v980 = vpack.c.b16 %v724, %v720
    %v981 = vpack.c.b16 %v725, %v721
    %v982 = vpack.c.b16 %v730, %v726
    %v983 = vpack.c.b16 %v731, %v727
    %v984 = vpack.c.b16 %v732, %v728
    %v985 = vpack.c.b16 %v733, %v729
    %v986 = vpack.c.b16 %v738, %v734
    %v987 = vpack.c.b16 %v739, %v735
    %v988 = vpack.c.b16 %v740, %v736
    %v989 = vpack.c.b16 %v741, %v737
    %v990 = vpack.c.b16 %v746, %v742
    %v991 = vpack.c.b16 %v747, %v743
    %v992 = vpack.c.b16 %v748, %v744
    %v993 = vpack.c.b16 %v749, %v745
    %v994 = vpack.c.b16 %v754, %v750
    %v995 = vpack.c.b16 %v755, %v751
    %v996 = vpack.c.b16 %v756, %v752
    %v997 = vpack.c.b16 %v757, %v753
    %v998 = vpack.c.b16 %v762, %v758
    %v999 = vpack.c.b16 %v763, %v759
    %v1000 = vpack.c.b16 %v764, %v760
    %v1001 = vpack.c.b16 %v765, %v761
    %v1002 = vpack.c.b16 %v770, %v766
    %v1003 = vpack.c.b16 %v771, %v767
    %v1004 = vpack.c.b16 %v772, %v768
    %v1005 = vpack.c.b16 %v773, %v769
    %v1006 = vpack.c.b16 %v778, %v774
    %v1007 = vpack.c.b16 %v779, %v775
    %v1008 = vpack.c.b16 %v780, %v776
    %v1009 = vpack.c.b16 %v781, %v777
    %v1010 = vpack.c.b16 %v786, %v782
    %v1011 = vpack.c.b16 %v787, %v783
    %v1012 = vpack.c.b16 %v788, %v784
    %v1013 = vpack.c.b16 %v789, %v785
    %v1014 = vpack.c.b16 %v794, %v790
    %v1015 = vpack.c.b16 %v795, %v791
    %v1016 = vpack.c.b16 %v796, %v792
    %v1017 = vpack.c.b16 %v797, %v793
    %v1018 = vpack.c.b16 %v802, %v798
    %v1019 = vpack.c.b16 %v803, %v799
    %v1020 = vpack.c.b16 %v804, %v800
    %v1021 = vpack.c.b16 %v805, %v801
    %v1022 = vpack.c.b16 %v810, %v806
    %v1023 = vpack.c.b16 %v811, %v807
    %v1024 = vpack.c.b16 %v812, %v808
    %v1025 = vpack.c.b16 %v813, %v809
    %v1026 = vpack.c.b16 %v818, %v814
    %v1027 = vpack.c.b16 %v819, %v815
    %v1028 = vpack.c.b16 %v820, %v816
    %v1029 = vpack.c.b16 %v821, %v817
    %v1030 = vpack.c.b16 %v826, %v822
    %v1031 = vpack.c.b16 %v827, %v823
    %v1032 = vpack.c.b16 %v828, %v824
    %v1033 = vpack.c.b16 %v829, %v825
    %v1034 = vpack.c.b16 %v834, %v830
    %v1035 = vpack.c.b16 %v835, %v831
    %v1036 = vpack.c.b16 %v836, %v832
    %v1037 = vpack.c.b16 %v837, %v833
    %v1038 = vpack.c.b16 %v842, %v838
    %v1039 = vpack.c.b16 %v843, %v839
    %v1040 = vpack.c.b16 %v844, %v840
    %v1041 = vpack.c.b16 %v845, %v841
    %vm1238 = vcmask 130048
    %v1240 = vsel %vm1238, %v51, 0
    %1242 = vmatpush.bf16.msra.mxu0 %v874
    %1243 = vmatpush.bf16.msra.mxu0 %v870
    %1244 = vmatpush.bf16.msra.mxu0 %v866
    %1245 = vmatpush.bf16.msra.mxu0 %v862
    %1246 = vmatpush.bf16.msra.mxu0 %v858
    %1247 = vmatpush.bf16.msra.mxu0 %v854
    %1248 = vmatpush.bf16.msra.mxu0 %v850
    %1249 = vmatpush.bf16.msra.mxu0 %v846
    %1250 = vmatmul.bf16.gmra.mxu0 %v45
    %v1251 = vpop.f32.mrf.mxu0
    %v1252 = vadd.f32 %v250, %v1251
    %v1253 = vpop.f32.mrf.mxu0
    %1254 = vdwg.mxu0
    %1255 = vmatpush.bf16.msra.mxu0 %v906
    %1256 = vmatpush.bf16.msra.mxu0 %v902
    %1257 = vmatpush.bf16.msra.mxu0 %v898
    %1258 = vmatpush.bf16.msra.mxu0 %v894
    %1259 = vmatpush.bf16.msra.mxu0 %v890
    %1260 = vmatpush.bf16.msra.mxu0 %v886
    %1261 = vmatpush.bf16.msra.mxu0 %v882
    %1262 = vmatpush.bf16.msra.mxu0 %v878
    %1263 = vmatmul.bf16.gmra.mxu0 %v46
    %v1264 = vpop.f32.mrf.mxu0
    %v1265 = vadd.f32 %v1252, %v1264
    %v1266 = vpop.f32.mrf.mxu0
    %1267 = vdwg.mxu0
    %1268 = vmatpush.bf16.msra.mxu0 %v938
    %1269 = vmatpush.bf16.msra.mxu0 %v934
    %1270 = vmatpush.bf16.msra.mxu0 %v930
    %1271 = vmatpush.bf16.msra.mxu0 %v926
    %1272 = vmatpush.bf16.msra.mxu0 %v922
    %1273 = vmatpush.bf16.msra.mxu0 %v918
    %1274 = vmatpush.bf16.msra.mxu0 %v914
    %1275 = vmatpush.bf16.msra.mxu0 %v910
    %1276 = vmatmul.bf16.gmra.mxu0 %v47
    %v1277 = vpop.f32.mrf.mxu0
    %v1278 = vadd.f32 %v1265, %v1277
    %v1279 = vpop.f32.mrf.mxu0
    %1280 = vdwg.mxu0
    %1281 = vmatpush.bf16.msra.mxu0 %v970
    %1282 = vmatpush.bf16.msra.mxu0 %v966
    %1283 = vmatpush.bf16.msra.mxu0 %v962
    %1284 = vmatpush.bf16.msra.mxu0 %v958
    %1285 = vmatpush.bf16.msra.mxu0 %v954
    %1286 = vmatpush.bf16.msra.mxu0 %v950
    %1287 = vmatpush.bf16.msra.mxu0 %v946
    %1288 = vmatpush.bf16.msra.mxu0 %v942
    %1289 = vmatmul.bf16.gmra.mxu0 %v48
    %v1290 = vpop.f32.mrf.mxu0
    %v1291 = vadd.f32 %v1278, %v1290
    %v1292 = vpop.f32.mrf.mxu0
    %1293 = vdwg.mxu0
    %1294 = vmatpush.bf16.msra.mxu0 %v1002
    %1295 = vmatpush.bf16.msra.mxu0 %v998
    %1296 = vmatpush.bf16.msra.mxu0 %v994
    %1297 = vmatpush.bf16.msra.mxu0 %v990
    %1298 = vmatpush.bf16.msra.mxu0 %v986
    %1299 = vmatpush.bf16.msra.mxu0 %v982
    %1300 = vmatpush.bf16.msra.mxu0 %v978
    %1301 = vmatpush.bf16.msra.mxu0 %v974
    %1302 = vmatmul.bf16.gmra.mxu0 %v49
    %v1303 = vpop.f32.mrf.mxu0
    %v1304 = vadd.f32 %v1291, %v1303
    %v1305 = vpop.f32.mrf.mxu0
    %1306 = vdwg.mxu0
    %1307 = vmatpush.bf16.msra.mxu0 %v1034
    %1308 = vmatpush.bf16.msra.mxu0 %v1030
    %1309 = vmatpush.bf16.msra.mxu0 %v1026
    %1310 = vmatpush.bf16.msra.mxu0 %v1022
    %1311 = vmatpush.bf16.msra.mxu0 %v1018
    %1312 = vmatpush.bf16.msra.mxu0 %v1014
    %1313 = vmatpush.bf16.msra.mxu0 %v1010
    %1314 = vmatpush.bf16.msra.mxu0 %v1006
    %1315 = vmatmul.bf16.gmra.mxu0 %v50
    %v1316 = vpop.f32.mrf.mxu0
    %v1317 = vadd.f32 %v1304, %v1316
    %v1318 = vpop.f32.mrf.mxu0
    %1319 = vdwg.mxu0
    %1320 = vmatpush.bf16.msra.mxu0 0
    %1321 = vmatpush.bf16.msra.mxu0 0
    %1322 = vmatpush.bf16.msra.mxu0 0
    %1323 = vmatpush.bf16.msra.mxu0 0
    %1324 = vmatpush.bf16.msra.mxu0 0
    %1325 = vmatpush.bf16.msra.mxu0 0
    %1326 = vmatpush.bf16.msra.mxu0 0
    %1327 = vmatpush.bf16.msra.mxu0 %v1038
    %1328 = vmatmul.bf16.gmra.mxu0 %v1240
    %v1329 = vpop.f32.mrf.mxu0
    %v1330 = vadd.f32 %v1317, %v1329
    %v1331 = vpop.f32.mrf.mxu0
    %1332 = vdwg.mxu0
    %1333 = vmatpush.bf16.msra.mxu0 %v875
    %1334 = vmatpush.bf16.msra.mxu0 %v871
    %1335 = vmatpush.bf16.msra.mxu0 %v867
    %1336 = vmatpush.bf16.msra.mxu0 %v863
    %1337 = vmatpush.bf16.msra.mxu0 %v859
    %1338 = vmatpush.bf16.msra.mxu0 %v855
    %1339 = vmatpush.bf16.msra.mxu0 %v851
    %1340 = vmatpush.bf16.msra.mxu0 %v847
    %1341 = vmatmul.bf16.gmra.mxu0 %v45
    %v1342 = vpop.f32.mrf.mxu0
    %v1343 = vadd.f32 %v251, %v1342
    %v1344 = vpop.f32.mrf.mxu0
    %1345 = vdwg.mxu0
    %1346 = vmatpush.bf16.msra.mxu0 %v907
    %1347 = vmatpush.bf16.msra.mxu0 %v903
    %1348 = vmatpush.bf16.msra.mxu0 %v899
    %1349 = vmatpush.bf16.msra.mxu0 %v895
    %1350 = vmatpush.bf16.msra.mxu0 %v891
    %1351 = vmatpush.bf16.msra.mxu0 %v887
    %1352 = vmatpush.bf16.msra.mxu0 %v883
    %1353 = vmatpush.bf16.msra.mxu0 %v879
    %1354 = vmatmul.bf16.gmra.mxu0 %v46
    %v1355 = vpop.f32.mrf.mxu0
    %v1356 = vadd.f32 %v1343, %v1355
    %v1357 = vpop.f32.mrf.mxu0
    %1358 = vdwg.mxu0
    %1359 = vmatpush.bf16.msra.mxu0 %v939
    %1360 = vmatpush.bf16.msra.mxu0 %v935
    %1361 = vmatpush.bf16.msra.mxu0 %v931
    %1362 = vmatpush.bf16.msra.mxu0 %v927
    %1363 = vmatpush.bf16.msra.mxu0 %v923
    %1364 = vmatpush.bf16.msra.mxu0 %v919
    %1365 = vmatpush.bf16.msra.mxu0 %v915
    %1366 = vmatpush.bf16.msra.mxu0 %v911
    %1367 = vmatmul.bf16.gmra.mxu0 %v47
    %v1368 = vpop.f32.mrf.mxu0
    %v1369 = vadd.f32 %v1356, %v1368
    %v1370 = vpop.f32.mrf.mxu0
    %1371 = vdwg.mxu0
    %1372 = vmatpush.bf16.msra.mxu0 %v971
    %1373 = vmatpush.bf16.msra.mxu0 %v967
    %1374 = vmatpush.bf16.msra.mxu0 %v963
    %1375 = vmatpush.bf16.msra.mxu0 %v959
    %1376 = vmatpush.bf16.msra.mxu0 %v955
    %1377 = vmatpush.bf16.msra.mxu0 %v951
    %1378 = vmatpush.bf16.msra.mxu0 %v947
    %1379 = vmatpush.bf16.msra.mxu0 %v943
    %1380 = vmatmul.bf16.gmra.mxu0 %v48
    %v1381 = vpop.f32.mrf.mxu0
    %v1382 = vadd.f32 %v1369, %v1381
    %v1383 = vpop.f32.mrf.mxu0
    %1384 = vdwg.mxu0
    %1385 = vmatpush.bf16.msra.mxu0 %v1003
    %1386 = vmatpush.bf16.msra.mxu0 %v999
    %1387 = vmatpush.bf16.msra.mxu0 %v995
    %1388 = vmatpush.bf16.msra.mxu0 %v991
    %1389 = vmatpush.bf16.msra.mxu0 %v987
    %1390 = vmatpush.bf16.msra.mxu0 %v983
    %1391 = vmatpush.bf16.msra.mxu0 %v979
    %1392 = vmatpush.bf16.msra.mxu0 %v975
    %1393 = vmatmul.bf16.gmra.mxu0 %v49
    %v1394 = vpop.f32.mrf.mxu0
    %v1395 = vadd.f32 %v1382, %v1394
    %v1396 = vpop.f32.mrf.mxu0
    %1397 = vdwg.mxu0
    %1398 = vmatpush.bf16.msra.mxu0 %v1035
    %1399 = vmatpush.bf16.msra.mxu0 %v1031
    %1400 = vmatpush.bf16.msra.mxu0 %v1027
    %1401 = vmatpush.bf16.msra.mxu0 %v1023
    %1402 = vmatpush.bf16.msra.mxu0 %v1019
    %1403 = vmatpush.bf16.msra.mxu0 %v1015
    %1404 = vmatpush.bf16.msra.mxu0 %v1011
    %1405 = vmatpush.bf16.msra.mxu0 %v1007
    %1406 = vmatmul.bf16.gmra.mxu0 %v50
    %v1407 = vpop.f32.mrf.mxu0
    %v1408 = vadd.f32 %v1395, %v1407
    %v1409 = vpop.f32.mrf.mxu0
    %1410 = vdwg.mxu0
    %1411 = vmatpush.bf16.msra.mxu0 0
    %1412 = vmatpush.bf16.msra.mxu0 0
    %1413 = vmatpush.bf16.msra.mxu0 0
    %1414 = vmatpush.bf16.msra.mxu0 0
    %1415 = vmatpush.bf16.msra.mxu0 0
    %1416 = vmatpush.bf16.msra.mxu0 0
    %1417 = vmatpush.bf16.msra.mxu0 0
    %1418 = vmatpush.bf16.msra.mxu0 %v1039
    %1419 = vmatmul.bf16.gmra.mxu0 %v1240
    %v1420 = vpop.f32.mrf.mxu0
    %v1421 = vadd.f32 %v1408, %v1420
    %v1422 = vpop.f32.mrf.mxu0
    %1423 = vdwg.mxu0
    %1424 = vmatpush.bf16.msra.mxu0 %v876
    %1425 = vmatpush.bf16.msra.mxu0 %v872
    %1426 = vmatpush.bf16.msra.mxu0 %v868
    %1427 = vmatpush.bf16.msra.mxu0 %v864
    %1428 = vmatpush.bf16.msra.mxu0 %v860
    %1429 = vmatpush.bf16.msra.mxu0 %v856
    %1430 = vmatpush.bf16.msra.mxu0 %v852
    %1431 = vmatpush.bf16.msra.mxu0 %v848
    %1432 = vmatmul.bf16.gmra.mxu0 %v45
    %v1433 = vpop.f32.mrf.mxu0
    %v1434 = vadd.f32 %v252, %v1433
    %v1435 = vpop.f32.mrf.mxu0
    %1436 = vdwg.mxu0
    %1437 = vmatpush.bf16.msra.mxu0 %v908
    %1438 = vmatpush.bf16.msra.mxu0 %v904
    %1439 = vmatpush.bf16.msra.mxu0 %v900
    %1440 = vmatpush.bf16.msra.mxu0 %v896
    %1441 = vmatpush.bf16.msra.mxu0 %v892
    %1442 = vmatpush.bf16.msra.mxu0 %v888
    %1443 = vmatpush.bf16.msra.mxu0 %v884
    %1444 = vmatpush.bf16.msra.mxu0 %v880
    %1445 = vmatmul.bf16.gmra.mxu0 %v46
    %v1446 = vpop.f32.mrf.mxu0
    %v1447 = vadd.f32 %v1434, %v1446
    %v1448 = vpop.f32.mrf.mxu0
    %1449 = vdwg.mxu0
    %1450 = vmatpush.bf16.msra.mxu0 %v940
    %1451 = vmatpush.bf16.msra.mxu0 %v936
    %1452 = vmatpush.bf16.msra.mxu0 %v932
    %1453 = vmatpush.bf16.msra.mxu0 %v928
    %1454 = vmatpush.bf16.msra.mxu0 %v924
    %1455 = vmatpush.bf16.msra.mxu0 %v920
    %1456 = vmatpush.bf16.msra.mxu0 %v916
    %1457 = vmatpush.bf16.msra.mxu0 %v912
    %1458 = vmatmul.bf16.gmra.mxu0 %v47
    %v1459 = vpop.f32.mrf.mxu0
    %v1460 = vadd.f32 %v1447, %v1459
    %v1461 = vpop.f32.mrf.mxu0
    %1462 = vdwg.mxu0
    %1463 = vmatpush.bf16.msra.mxu0 %v972
    %1464 = vmatpush.bf16.msra.mxu0 %v968
    %1465 = vmatpush.bf16.msra.mxu0 %v964
    %1466 = vmatpush.bf16.msra.mxu0 %v960
    %1467 = vmatpush.bf16.msra.mxu0 %v956
    %1468 = vmatpush.bf16.msra.mxu0 %v952
    %1469 = vmatpush.bf16.msra.mxu0 %v948
    %1470 = vmatpush.bf16.msra.mxu0 %v944
    %1471 = vmatmul.bf16.gmra.mxu0 %v48
    %v1472 = vpop.f32.mrf.mxu0
    %v1473 = vadd.f32 %v1460, %v1472
    %v1474 = vpop.f32.mrf.mxu0
    %1475 = vdwg.mxu0
    %1476 = vmatpush.bf16.msra.mxu0 %v1004
    %1477 = vmatpush.bf16.msra.mxu0 %v1000
    %1478 = vmatpush.bf16.msra.mxu0 %v996
    %1479 = vmatpush.bf16.msra.mxu0 %v992
    %1480 = vmatpush.bf16.msra.mxu0 %v988
    %1481 = vmatpush.bf16.msra.mxu0 %v984
    %1482 = vmatpush.bf16.msra.mxu0 %v980
    %1483 = vmatpush.bf16.msra.mxu0 %v976
    %1484 = vmatmul.bf16.gmra.mxu0 %v49
    %v1485 = vpop.f32.mrf.mxu0
    %v1486 = vadd.f32 %v1473, %v1485
    %v1487 = vpop.f32.mrf.mxu0
    %1488 = vdwg.mxu0
    %1489 = vmatpush.bf16.msra.mxu0 %v1036
    %1490 = vmatpush.bf16.msra.mxu0 %v1032
    %1491 = vmatpush.bf16.msra.mxu0 %v1028
    %1492 = vmatpush.bf16.msra.mxu0 %v1024
    %1493 = vmatpush.bf16.msra.mxu0 %v1020
    %1494 = vmatpush.bf16.msra.mxu0 %v1016
    %1495 = vmatpush.bf16.msra.mxu0 %v1012
    %1496 = vmatpush.bf16.msra.mxu0 %v1008
    %1497 = vmatmul.bf16.gmra.mxu0 %v50
    %v1498 = vpop.f32.mrf.mxu0
    %v1499 = vadd.f32 %v1486, %v1498
    %v1500 = vpop.f32.mrf.mxu0
    %1501 = vdwg.mxu0
    %1502 = vmatpush.bf16.msra.mxu0 0
    %1503 = vmatpush.bf16.msra.mxu0 0
    %1504 = vmatpush.bf16.msra.mxu0 0
    %1505 = vmatpush.bf16.msra.mxu0 0
    %1506 = vmatpush.bf16.msra.mxu0 0
    %1507 = vmatpush.bf16.msra.mxu0 0
    %1508 = vmatpush.bf16.msra.mxu0 0
    %1509 = vmatpush.bf16.msra.mxu0 %v1040
    %1510 = vmatmul.bf16.gmra.mxu0 %v1240
    %v1511 = vpop.f32.mrf.mxu0
    %v1512 = vadd.f32 %v1499, %v1511
    %v1513 = vpop.f32.mrf.mxu0
    %1514 = vdwg.mxu0
    %1515 = vmatpush.bf16.msra.mxu0 %v877
    %1516 = vmatpush.bf16.msra.mxu0 %v873
    %1517 = vmatpush.bf16.msra.mxu0 %v869
    %1518 = vmatpush.bf16.msra.mxu0 %v865
    %1519 = vmatpush.bf16.msra.mxu0 %v861
    %1520 = vmatpush.bf16.msra.mxu0 %v857
    %1521 = vmatpush.bf16.msra.mxu0 %v853
    %1522 = vmatpush.bf16.msra.mxu0 %v849
    %1523 = vmatmul.bf16.gmra.mxu0 %v45
    %v1524 = vpop.f32.mrf.mxu0
    %v1525 = vadd.f32 %v253, %v1524
    %v1526 = vpop.f32.mrf.mxu0
    %1527 = vdwg.mxu0
    %1528 = vmatpush.bf16.msra.mxu0 %v909
    %1529 = vmatpush.bf16.msra.mxu0 %v905
    %1530 = vmatpush.bf16.msra.mxu0 %v901
    %1531 = vmatpush.bf16.msra.mxu0 %v897
    %1532 = vmatpush.bf16.msra.mxu0 %v893
    %1533 = vmatpush.bf16.msra.mxu0 %v889
    %1534 = vmatpush.bf16.msra.mxu0 %v885
    %1535 = vmatpush.bf16.msra.mxu0 %v881
    %1536 = vmatmul.bf16.gmra.mxu0 %v46
    %v1537 = vpop.f32.mrf.mxu0
    %v1538 = vadd.f32 %v1525, %v1537
    %v1539 = vpop.f32.mrf.mxu0
    %1540 = vdwg.mxu0
    %1541 = vmatpush.bf16.msra.mxu0 %v941
    %1542 = vmatpush.bf16.msra.mxu0 %v937
    %1543 = vmatpush.bf16.msra.mxu0 %v933
    %1544 = vmatpush.bf16.msra.mxu0 %v929
    %1545 = vmatpush.bf16.msra.mxu0 %v925
    %1546 = vmatpush.bf16.msra.mxu0 %v921
    %1547 = vmatpush.bf16.msra.mxu0 %v917
    %1548 = vmatpush.bf16.msra.mxu0 %v913
    %1549 = vmatmul.bf16.gmra.mxu0 %v47
    %v1550 = vpop.f32.mrf.mxu0
    %v1551 = vadd.f32 %v1538, %v1550
    %v1552 = vpop.f32.mrf.mxu0
    %1553 = vdwg.mxu0
    %1554 = vmatpush.bf16.msra.mxu0 %v973
    %1555 = vmatpush.bf16.msra.mxu0 %v969
    %1556 = vmatpush.bf16.msra.mxu0 %v965
    %1557 = vmatpush.bf16.msra.mxu0 %v961
    %1558 = vmatpush.bf16.msra.mxu0 %v957
    %1559 = vmatpush.bf16.msra.mxu0 %v953
    %1560 = vmatpush.bf16.msra.mxu0 %v949
    %1561 = vmatpush.bf16.msra.mxu0 %v945
    %1562 = vmatmul.bf16.gmra.mxu0 %v48
    %v1563 = vpop.f32.mrf.mxu0
    %v1564 = vadd.f32 %v1551, %v1563
    %v1565 = vpop.f32.mrf.mxu0
    %1566 = vdwg.mxu0
    %1567 = vmatpush.bf16.msra.mxu0 %v1005
    %1568 = vmatpush.bf16.msra.mxu0 %v1001
    %1569 = vmatpush.bf16.msra.mxu0 %v997
    %1570 = vmatpush.bf16.msra.mxu0 %v993
    %1571 = vmatpush.bf16.msra.mxu0 %v989
    %1572 = vmatpush.bf16.msra.mxu0 %v985
    %1573 = vmatpush.bf16.msra.mxu0 %v981
    %1574 = vmatpush.bf16.msra.mxu0 %v977
    %1575 = vmatmul.bf16.gmra.mxu0 %v49
    %v1576 = vpop.f32.mrf.mxu0
    %v1577 = vadd.f32 %v1564, %v1576
    %v1578 = vpop.f32.mrf.mxu0
    %1579 = vdwg.mxu0
    %1580 = vmatpush.bf16.msra.mxu0 %v1037
    %1581 = vmatpush.bf16.msra.mxu0 %v1033
    %1582 = vmatpush.bf16.msra.mxu0 %v1029
    %1583 = vmatpush.bf16.msra.mxu0 %v1025
    %1584 = vmatpush.bf16.msra.mxu0 %v1021
    %1585 = vmatpush.bf16.msra.mxu0 %v1017
    %1586 = vmatpush.bf16.msra.mxu0 %v1013
    %1587 = vmatpush.bf16.msra.mxu0 %v1009
    %1588 = vmatmul.bf16.gmra.mxu0 %v50
    %v1589 = vpop.f32.mrf.mxu0
    %v1590 = vadd.f32 %v1577, %v1589
    %v1591 = vpop.f32.mrf.mxu0
    %1592 = vdwg.mxu0
    %1593 = vmatpush.bf16.msra.mxu0 0
    %1594 = vmatpush.bf16.msra.mxu0 0
    %1595 = vmatpush.bf16.msra.mxu0 0
    %1596 = vmatpush.bf16.msra.mxu0 0
    %1597 = vmatpush.bf16.msra.mxu0 0
    %1598 = vmatpush.bf16.msra.mxu0 0
    %1599 = vmatpush.bf16.msra.mxu0 0
    %1600 = vmatpush.bf16.msra.mxu0 %v1041
    %1601 = vmatmul.bf16.gmra.mxu0 %v1240
    %v1602 = vpop.f32.mrf.mxu0
    %v1603 = vadd.f32 %v1590, %v1602
    %v1604 = vpop.f32.mrf.mxu0
    %1605 = vdwg.mxu0
    %v1606 = vpack.c.bf16 %v1330, %v1330
    %v1607 = vpack.c.bf16 %v1421, %v1421
    %v1608 = vpack.c.bf16 %v1512, %v1512
    %v1609 = vpack.c.bf16 %v1603, %v1603
    %v1610 = vunpack.c.l.bf16 %v1606
    %v1611 = vunpack.c.l.bf16 %v1607
    %v1612 = vunpack.c.l.bf16 %v1608
    %v1613 = vunpack.c.l.bf16 %v1609
    %v1614 = vtanh.pop %v1610
    %v1615 = vtanh.pop %v1611
    %v1616 = vtanh.pop %v1612
    %v1617 = vtanh.pop %v1613
    %v1618 = vpack.c.bf16 %v1614, %v1614
    %v1619 = vpack.c.bf16 %v1615, %v1615
    %v1620 = vpack.c.bf16 %v1616, %v1616
    %v1621 = vpack.c.bf16 %v1617, %v1617
    %v1622 = vld [vmem:[%s3] sm:$0xf]
    %v1623 = vld [vmem:[%s3 + $0x4] sm:$0xf]
    %v1624 = vld [vmem:[%s3 + $0x8] sm:$0xf]
    %v1625 = vld [vmem:[%s3 + $0xc] sm:$0xf]
    %v1626 = vld [vmem:[%s3 + $0x10] sm:$0xf]
    %v1627 = vld [vmem:[%s3 + $0x14] sm:$0xf]
    %v1628 = vld [vmem:[%s3 + $0x18] sm:$0xf]
    %v1629 = vld [vmem:[%s3 + $0x1c] sm:$0xf]
    %v1630 = vld [vmem:[%s3 + $0x20] sm:$0xf]
    %v1631 = vld [vmem:[%s3 + $0x24] sm:$0xf]
    %v1632 = vld [vmem:[%s3 + $0x28] sm:$0xf]
    %v1633 = vld [vmem:[%s3 + $0x2c] sm:$0xf]
    %v1634 = vld [vmem:[%s3 + $0x30] sm:$0xf]
    %v1635 = vld [vmem:[%s3 + $0x34] sm:$0xf]
    %v1636 = vld [vmem:[%s3 + $0x38] sm:$0xf]
    %v1637 = vld [vmem:[%s3 + $0x3c] sm:$0xf]
    %v1638 = vld [vmem:[%s3 + $0x40] sm:$0xf]
    %v1639 = vld [vmem:[%s3 + $0x44] sm:$0xf]
    %v1640 = vld [vmem:[%s3 + $0x48] sm:$0xf]
    %v1641 = vld [vmem:[%s3 + $0x4c] sm:$0xf]
    %v1642 = vld [vmem:[%s3 + $0x50] sm:$0xf]
    %v1643 = vld [vmem:[%s3 + $0x54] sm:$0xf]
    %v1644 = vld [vmem:[%s3 + $0x58] sm:$0xf]
    %v1645 = vld [vmem:[%s3 + $0x5c] sm:$0xf]
    %v1646 = vld [vmem:[%s3 + $0x60] sm:$0xf]
    %v1647 = vld [vmem:[%s3 + $0x64] sm:$0xf]
    %v1648 = vld [vmem:[%s3 + $0x68] sm:$0xf]
    %v1649 = vld [vmem:[%s3 + $0x6c] sm:$0xf]
    %v1650 = vld [vmem:[%s3 + $0x70] sm:$0xf]
    %v1651 = vld [vmem:[%s3 + $0x74] sm:$0xf]
    %v1652 = vld [vmem:[%s3 + $0x78] sm:$0xf]
    %v1653 = vld [vmem:[%s3 + $0x7c] sm:$0xf]
    %v1654 = vld [vmem:[%s3 + $0x80] sm:$0xf]
    %v1655 = vld [vmem:[%s3 + $0x84] sm:$0xf]
    %v1656 = vld [vmem:[%s3 + $0x88] sm:$0xf]
    %v1657 = vld [vmem:[%s3 + $0x8c] sm:$0xf]
    %v1658 = vld [vmem:[%s3 + $0x90] sm:$0xf]
    %v1659 = vld [vmem:[%s3 + $0x94] sm:$0xf]
    %v1660 = vld [vmem:[%s3 + $0x98] sm:$0xf]
    %v1661 = vld [vmem:[%s3 + $0x9c] sm:$0xf]
    %v1662 = vld [vmem:[%s3 + $0xa0] sm:$0xf]
    %v1663 = vld [vmem:[%s3 + $0xa4] sm:$0xf]
    %v1664 = vld [vmem:[%s3 + $0xa8] sm:$0xf]
    %v1665 = vld [vmem:[%s3 + $0xac] sm:$0xf]
    %v1666 = vld [vmem:[%s3 + $0xb0] sm:$0xf]
    %v1667 = vld [vmem:[%s3 + $0xb4] sm:$0xf]
    %v1668 = vld [vmem:[%s3 + $0xb8] sm:$0xf]
    %v1669 = vld [vmem:[%s3 + $0xbc] sm:$0xf]
    %v1670 = vld [vmem:[%s3 + $0xc0] sm:$0xf]
    %v1671 = vld [vmem:[%s3 + $0xc4] sm:$0xf]
    %v1672 = vld [vmem:[%s3 + $0xc8] sm:$0xf]
    %v1673 = vld [vmem:[%s3 + $0xcc] sm:$0xf]
    %v1674 = vld [vmem:[%s3 + $0xd0] sm:$0xf]
    %v1675 = vld [vmem:[%s3 + $0xd4] sm:$0xf]
    %v1676 = vld [vmem:[%s3 + $0xd8] sm:$0xf]
    %v1677 = vld [vmem:[%s3 + $0xdc] sm:$0xf]
    %v1678 = vld [vmem:[%s3 + $0xe0] sm:$0xf]
    %v1679 = vld [vmem:[%s3 + $0xe4] sm:$0xf]
    %v1680 = vld [vmem:[%s3 + $0xe8] sm:$0xf]
    %v1681 = vld [vmem:[%s3 + $0xec] sm:$0xf]
    %v1682 = vld [vmem:[%s3 + $0xf0] sm:$0xf]
    %v1683 = vld [vmem:[%s3 + $0xf4] sm:$0xf]
    %v1684 = vld [vmem:[%s3 + $0xf8] sm:$0xf]
    %v1685 = vld [vmem:[%s3 + $0xfc] sm:$0xf]
    %v1686 = vld [vmem:[%s4] sm:$0x1]
    %v1688 = vperm.slane %v1686, 0
    %v1754 = vunpack.c.l.b16 %v1622
    %v1755 = vunpack.c.l.b16 %v1623
    %v1756 = vunpack.c.l.b16 %v1624
    %v1757 = vunpack.c.l.b16 %v1625
    %v1758 = vunpack.c.l.b16 %v1626
    %v1759 = vunpack.c.l.b16 %v1627
    %v1760 = vunpack.c.l.b16 %v1628
    %v1761 = vunpack.c.l.b16 %v1629
    %v1762 = vunpack.c.l.b16 %v1630
    %v1763 = vunpack.c.l.b16 %v1631
    %v1764 = vunpack.c.l.b16 %v1632
    %v1765 = vunpack.c.l.b16 %v1633
    %v1766 = vunpack.c.l.b16 %v1634
    %v1767 = vunpack.c.l.b16 %v1635
    %v1768 = vunpack.c.l.b16 %v1636
    %v1769 = vunpack.c.l.b16 %v1637
    %v1770 = vunpack.c.l.b16 %v1638
    %v1771 = vunpack.c.l.b16 %v1639
    %v1772 = vunpack.c.l.b16 %v1640
    %v1773 = vunpack.c.l.b16 %v1641
    %v1774 = vunpack.c.l.b16 %v1642
    %v1775 = vunpack.c.l.b16 %v1643
    %v1776 = vunpack.c.l.b16 %v1644
    %v1777 = vunpack.c.l.b16 %v1645
    %v1778 = vunpack.c.l.b16 %v1646
    %v1779 = vunpack.c.l.b16 %v1647
    %v1780 = vunpack.c.l.b16 %v1648
    %v1781 = vunpack.c.l.b16 %v1649
    %v1782 = vunpack.c.l.b16 %v1650
    %v1783 = vunpack.c.l.b16 %v1651
    %v1784 = vunpack.c.l.b16 %v1652
    %v1785 = vunpack.c.l.b16 %v1653
    %v1786 = vunpack.c.l.b16 %v1654
    %v1787 = vunpack.c.l.b16 %v1655
    %v1788 = vunpack.c.l.b16 %v1656
    %v1789 = vunpack.c.l.b16 %v1657
    %v1790 = vunpack.c.l.b16 %v1658
    %v1791 = vunpack.c.l.b16 %v1659
    %v1792 = vunpack.c.l.b16 %v1660
    %v1793 = vunpack.c.l.b16 %v1661
    %v1794 = vunpack.c.l.b16 %v1662
    %v1795 = vunpack.c.l.b16 %v1663
    %v1796 = vunpack.c.l.b16 %v1664
    %v1797 = vunpack.c.l.b16 %v1665
    %v1798 = vunpack.c.l.b16 %v1666
    %v1799 = vunpack.c.l.b16 %v1667
    %v1800 = vunpack.c.l.b16 %v1668
    %v1801 = vunpack.c.l.b16 %v1669
    %v1802 = vunpack.c.l.b16 %v1670
    %v1803 = vunpack.c.l.b16 %v1671
    %v1804 = vunpack.c.l.b16 %v1672
    %v1805 = vunpack.c.l.b16 %v1673
    %v1806 = vunpack.c.l.b16 %v1674
    %v1807 = vunpack.c.l.b16 %v1675
    %v1808 = vunpack.c.l.b16 %v1676
    %v1809 = vunpack.c.l.b16 %v1677
    %v1810 = vunpack.c.l.b16 %v1678
    %v1811 = vunpack.c.l.b16 %v1679
    %v1812 = vunpack.c.l.b16 %v1680
    %v1813 = vunpack.c.l.b16 %v1681
    %v1814 = vunpack.c.l.b16 %v1682
    %v1815 = vunpack.c.l.b16 %v1683
    %v1816 = vunpack.c.l.b16 %v1684
    %v1817 = vunpack.c.l.b16 %v1685
    %v1818 = vpack.c.b16 %v1755, %v1754
    %v1819 = vpack.c.b16 %v1757, %v1756
    %v1820 = vpack.c.b16 %v1759, %v1758
    %v1821 = vpack.c.b16 %v1761, %v1760
    %v1822 = vpack.c.b16 %v1763, %v1762
    %v1823 = vpack.c.b16 %v1765, %v1764
    %v1824 = vpack.c.b16 %v1767, %v1766
    %v1825 = vpack.c.b16 %v1769, %v1768
    %v1826 = vpack.c.b16 %v1771, %v1770
    %v1827 = vpack.c.b16 %v1773, %v1772
    %v1828 = vpack.c.b16 %v1775, %v1774
    %v1829 = vpack.c.b16 %v1777, %v1776
    %v1830 = vpack.c.b16 %v1779, %v1778
    %v1831 = vpack.c.b16 %v1781, %v1780
    %v1832 = vpack.c.b16 %v1783, %v1782
    %v1833 = vpack.c.b16 %v1785, %v1784
    %v1834 = vpack.c.b16 %v1787, %v1786
    %v1835 = vpack.c.b16 %v1789, %v1788
    %v1836 = vpack.c.b16 %v1791, %v1790
    %v1837 = vpack.c.b16 %v1793, %v1792
    %v1838 = vpack.c.b16 %v1795, %v1794
    %v1839 = vpack.c.b16 %v1797, %v1796
    %v1840 = vpack.c.b16 %v1799, %v1798
    %v1841 = vpack.c.b16 %v1801, %v1800
    %v1842 = vpack.c.b16 %v1803, %v1802
    %v1843 = vpack.c.b16 %v1805, %v1804
    %v1844 = vpack.c.b16 %v1807, %v1806
    %v1845 = vpack.c.b16 %v1809, %v1808
    %v1846 = vpack.c.b16 %v1811, %v1810
    %v1847 = vpack.c.b16 %v1813, %v1812
    %v1848 = vpack.c.b16 %v1815, %v1814
    %v1849 = vpack.c.b16 %v1817, %v1816
    %1882 = vmatpush.bf16.msra.mxu0 %v1825
    %1883 = vmatpush.bf16.msra.mxu0 %v1824
    %1884 = vmatpush.bf16.msra.mxu0 %v1823
    %1885 = vmatpush.bf16.msra.mxu0 %v1822
    %1886 = vmatpush.bf16.msra.mxu0 %v1821
    %1887 = vmatpush.bf16.msra.mxu0 %v1820
    %1888 = vmatpush.bf16.msra.mxu0 %v1819
    %1889 = vmatpush.bf16.msra.mxu0 %v1818
    %1890 = vmatmul.bf16.gmra.mxu0 %v1618
    %v1891 = vpop.f32.mrf.mxu0
    %v1892 = vadd.f32 %v1688, %v1891
    %v1893 = vpop.f32.mrf.mxu0
    %1894 = vdwg.mxu0
    %1895 = vmatpush.bf16.msra.mxu0 %v1833
    %1896 = vmatpush.bf16.msra.mxu0 %v1832
    %1897 = vmatpush.bf16.msra.mxu0 %v1831
    %1898 = vmatpush.bf16.msra.mxu0 %v1830
    %1899 = vmatpush.bf16.msra.mxu0 %v1829
    %1900 = vmatpush.bf16.msra.mxu0 %v1828
    %1901 = vmatpush.bf16.msra.mxu0 %v1827
    %1902 = vmatpush.bf16.msra.mxu0 %v1826
    %1903 = vmatmul.bf16.gmra.mxu0 %v1619
    %v1904 = vpop.f32.mrf.mxu0
    %v1905 = vadd.f32 %v1892, %v1904
    %v1906 = vpop.f32.mrf.mxu0
    %1907 = vdwg.mxu0
    %1908 = vmatpush.bf16.msra.mxu0 %v1841
    %1909 = vmatpush.bf16.msra.mxu0 %v1840
    %1910 = vmatpush.bf16.msra.mxu0 %v1839
    %1911 = vmatpush.bf16.msra.mxu0 %v1838
    %1912 = vmatpush.bf16.msra.mxu0 %v1837
    %1913 = vmatpush.bf16.msra.mxu0 %v1836
    %1914 = vmatpush.bf16.msra.mxu0 %v1835
    %1915 = vmatpush.bf16.msra.mxu0 %v1834
    %1916 = vmatmul.bf16.gmra.mxu0 %v1620
    %v1917 = vpop.f32.mrf.mxu0
    %v1918 = vadd.f32 %v1905, %v1917
    %v1919 = vpop.f32.mrf.mxu0
    %1920 = vdwg.mxu0
    %1921 = vmatpush.bf16.msra.mxu0 %v1849
    %1922 = vmatpush.bf16.msra.mxu0 %v1848
    %1923 = vmatpush.bf16.msra.mxu0 %v1847
    %1924 = vmatpush.bf16.msra.mxu0 %v1846
    %1925 = vmatpush.bf16.msra.mxu0 %v1845
    %1926 = vmatpush.bf16.msra.mxu0 %v1844
    %1927 = vmatpush.bf16.msra.mxu0 %v1843
    %1928 = vmatpush.bf16.msra.mxu0 %v1842
    %1929 = vmatmul.bf16.gmra.mxu0 %v1621
    %v1930 = vpop.f32.mrf.mxu0
    %v1931 = vadd.f32 %v1918, %v1930
    %v1932 = vpop.f32.mrf.mxu0
    %1933 = vdwg.mxu0
    %vm1934 = vcmp.gt.f32.partialorder %v1931, 0.0
    %v1935 = vmul.f32 %v1931, 0.2
    %v1936 = vsel %vm1934, %v1931, %v1935
    %1937 = vst [vmem:[#allocation5] sm:$0xff] %v1936
    // Predicated region
    $region26: #{simple_nn_forward.1} parent=1 // pred_check
      _
    $region27: #{simple_nn_forward.1} parent=1 // pred_check_branch
      %1939 = sbr.rel (0) target = $region29
    $region28: #{simple_nn_forward.1} parent=1 // pred_region
      %1941 = vsyncadd [#allocation4], 0
      %s1943 = sshll.u32 [#allocation5], 4
      %s1944 = int_to_ptr.vmem [resolvable:$true] %s1943
      %s1945 = sshll.u32 %s5, 4
      %s1946 = int_to_ptr.hbm [resolvable:$true] %s1945
      %1948 = dma.vmem_to_hbm [thread:$0]  %s1944, 128, %s1946, [#allocation4]
    $region29: #{simple_nn_forward.1} parent=1 // pred_fallthru
      _
    // Predicated region
    $region30: #{simple_nn_forward.1} parent=1 // pred_check
      _
    $region31: #{simple_nn_forward.1} parent=1 // pred_check_branch
      %1950 = sbr.rel (0) target = $region33
    $region32: #{simple_nn_forward.1} parent=1 // pred_region
      %1952 = dma.done [#allocation4], 128
    $region33: #{simple_nn_forward.1} parent=1 // pred_fallthru
      _
    %1953 = vsyncpa [#allocation3], 1
    %1954 = vsyncpa [#allocation4], 1

</llo_original>
